<compile_context>
chip_gen: v6e
topology: v6e:2x2x1
jax: 0.10.0
libtpu: 0.0.40
codegen_flags: <defaults>
</compile_context>

<pallas_src>
import functools

import jax
import jax.numpy as jnp
import numpy as np
from jax.experimental import pallas as pl
from jax.experimental.pallas import tpu as pltpu


# ----------------------------------------------------------------------------
# Small helpers
# ----------------------------------------------------------------------------
def _round_up(x, m):
    return ((x + m - 1) // m) * m


def _cdiv(a, b):
    return (a + b - 1) // b


def conv2d_output_size(hw, padding, kernel_size, stride):
    return (
        int(np.floor((hw[0] + 2 * padding[0] - (kernel_size[0] - 1) - 1) / stride[0] + 1)),
        int(np.floor((hw[1] + 2 * padding[1] - (kernel_size[1] - 1) - 1) / stride[1] + 1)),
    )


@functools.lru_cache(maxsize=None)
def _vmem_limit_bytes():
    """Per-generation VMEM cap with headroom for Mosaic internal scratch and
    semaphores (never request all of v7x's 64 MiB physical VMEM)."""
    try:
        cap = int(pltpu.get_tpu_info().vmem_capacity_bytes)
    except Exception:
        cap = 64 * 1024 * 1024
    # ~48 MiB on v7x (64 MiB physical), ~96 MiB on v5e / v6e (128 MiB physical)
    return int(min(cap * 3 // 4, 100 * 1024 * 1024))


@functools.lru_cache(maxsize=None)
def _compiler_params():
    return pltpu.CompilerParams(
        dimension_semantics=("parallel",),          # M axis: megacore-shardable
        vmem_limit_bytes=_vmem_limit_bytes(),
    )


@functools.lru_cache(maxsize=None)
def _tm_max():
    """Max rows per M tile: 128 on v5e (128x128 MXU, tighter VMEM), else 256."""
    try:
        kind = jax.devices()[0].device_kind.lower()
        if "v5 lite" in kind or "v5e" in kind or "v5lite" in kind:
            return 128
    except Exception:
        pass
    return 256


def _pick_tm(m_rows):
    """Row-tile size: multiple of 16 (bf16 (16,128) packed tiles), capped at
    _tm_max(), and small enough that the 'parallel' M grid has >= 2 steps
    whenever possible (so both v7x TensorCores get work)."""
    if m_rows <= 16:
        return 16
    half = _round_up(_cdiv(m_rows, 2), 16)
    return int(min(_tm_max(), half))


def _resident_spec(block_shape):
    """BlockSpec for a weight/bias that is constant across the grid: resident
    in VMEM and single-buffered (double-buffering a never-changing block only
    wastes VMEM)."""
    index_map = lambda i: (0, 0)
    try:
        return pl.BlockSpec(block_shape, index_map, pipeline_mode=pl.Buffered(1))
    except (TypeError, AttributeError):     # older jax: no pipeline_mode kwarg
        return pl.BlockSpec(block_shape, index_map)


# ----------------------------------------------------------------------------
# Kernel 1: conv-as-GEMM with folded BN, ReLU, lane-dense 128-wide stores.
#   a: (tm, G*Kp) bf16   w: (G*Kp, 128) bf16 block-diagonal   b: (1, 128) f32
# ----------------------------------------------------------------------------
def _conv_gemm_kernel(a_ref, w_ref, b_ref, o_ref):
    acc = jnp.dot(a_ref[...], w_ref[...], preferred_element_type=jnp.float32)
    o_ref[...] = jnp.maximum(acc + b_ref[...], 0.0).astype(o_ref.dtype)


def conv_bn_relu(cols, w_diag, bias, nc):
    """cols: (M, Kp) bf16 im2col rows (K already padded to a 128 multiple),
    w_diag: (G*Kp, 128) bf16 block-diagonal weight, bias: (1, 128) f32.
    Returns relu(cols @ W + b) as an (M, nc) bf16 array.

    G = 128 // nc consecutive patch rows are produced per 128-lane output row,
    so every store is a full unmasked 128-lane vst; the (Mg, 128) result has
    the same row-major byte layout as the logical (M, nc) output."""
    M, kp = cols.shape
    g = 128 // nc
    kg = g * kp
    assert w_diag.shape == (kg, 128), (w_diag.shape, kg)
    assert bias.shape == (1, 128), bias.shape

    tm = _pick_tm(_cdiv(M, g))
    mg = _round_up(_cdiv(M, g), tm)          # grouped (lane-dense) rows, padded
    mp = mg * g                              # logical rows, padded
    if mp != M:
        cols = jnp.pad(cols, ((0, mp - M), (0, 0)))
    a = cols.reshape(mg, kg)                 # pure row-major regrouping

    out = pl.pallas_call(
        _conv_gemm_kernel,
        out_shape=jax.ShapeDtypeStruct((mg, 128), jnp.bfloat16),
        grid=(mg // tm,),
        in_specs=[
            pl.BlockSpec((tm, kg), lambda i: (i, 0)),   # activation tile
            _resident_spec((kg, 128)),                  # weight (resident, 1-buf)
            _resident_spec((1, 128)),                   # bias   (resident, 1-buf)
        ],
        out_specs=pl.BlockSpec((tm, 128), lambda i: (i, 0)),
        compiler_params=_compiler_params(),
    )(a, w_diag, bias)

    # Same bytes as (mp, nc) row-major; padded rows hold relu(bias) garbage and
    # are sliced off here (they must never reach downstream frames).
    return out.reshape(mp, nc)[:M]


# ----------------------------------------------------------------------------
# Kernel 2: fused MLP  out = relu(relu(A@W1+b1)@W2+b2)@W3 + b3
# h1/h2 stay in VMEM/vregs; weights resident (single-buffered) across the grid.
# All K/N dims are pre-padded to multiples of 128 in prepare_params().
# ----------------------------------------------------------------------------
def _mlp3_kernel(a_ref, w1_ref, b1_ref, w2_ref, b2_ref, w3_ref, b3_ref, o_ref):
    h = jnp.dot(a_ref[...], w1_ref[...], preferred_element_type=jnp.float32)
    h = jnp.maximum(h + b1_ref[...], 0.0).astype(w2_ref.dtype)
    h = jnp.dot(h, w2_ref[...], preferred_element_type=jnp.float32)
    h = jnp.maximum(h + b2_ref[...], 0.0).astype(w3_ref.dtype)
    # dropout (eval mode) -> identity
    h = jnp.dot(h, w3_ref[...], preferred_element_type=jnp.float32)
    o_ref[...] = (h + b3_ref[...]).astype(o_ref.dtype)


def mlp3(flat, params, embed_dim):
    """flat: (M, K) bf16 (NHWC-flattened conv2 output).  Returns (M, embed) f32."""
    M, K = flat.shape
    kp, n1p = params["fc1_w"].shape
    n2p = params["fc2_w"].shape[1]
    n3p = params["fc3_w"].shape[1]
    assert K <= kp, (K, kp)

    tm = _pick_tm(M)
    mp = _round_up(M, tm)
    a = flat
    if mp != M or kp != K:
        a = jnp.pad(a, ((0, mp - M), (0, kp - K)))
    a = a.astype(jnp.bfloat16)               # no-op when flat is already bf16

    out = pl.pallas_call(
        _mlp3_kernel,
        out_shape=jax.ShapeDtypeStruct((mp, n3p), jnp.float32),
        grid=(mp // tm,),
        in_specs=[
            pl.BlockSpec((tm, kp), lambda i: (i, 0)),   # activations
            _resident_spec((kp, n1p)), _resident_spec((1, n1p)),   # fc1
            _resident_spec((n1p, n2p)), _resident_spec((1, n2p)),  # fc2
            _resident_spec((n2p, n3p)), _resident_spec((1, n3p)),  # fc3
        ],
        out_specs=pl.BlockSpec((tm, n3p), lambda i: (i, 0)),
        compiler_params=_compiler_params(),
    )(a, params["fc1_w"], params["fc1_b"],
      params["fc2_w"], params["fc2_b"],
      params["fc3_w"], params["fc3_b"])
    return out[:M, :embed_dim]


# ----------------------------------------------------------------------------
# Host-side batched im2col over all B*T frames; K can be emitted pre-padded.
# x: (N, H, W, C) -> cols: (N*OH*OW, K[pad]) with patch features in (kh,kw,ci).
# ----------------------------------------------------------------------------
def im2col(x, kh, kw, sh, sw, k_target=None):
    N, H, W, C = x.shape
    oh = (H - kh) // sh + 1
    ow = (W - kw) // sw + 1
    patches = [
        x[:, i:i + sh * (oh - 1) + 1:sh, j:j + sw * (ow - 1) + 1:sw, :]
        for i in range(kh) for j in range(kw)
    ]
    k = kh * kw * C
    if k_target is not None:
        assert k_target >= k, (k_target, k)
        if k_target > k:
            patches.append(jnp.zeros((N, oh, ow, k_target - k), x.dtype))
    cols = jnp.concatenate(patches, axis=-1)
    return cols.reshape(N * oh * ow, -1), (oh, ow)


# ----------------------------------------------------------------------------
# Parameter construction.  init_params: deterministic synthetic f32 params with
# eval-mode BatchNorm folded (exact).  prepare_params: one-time layout/dtype
# preparation for the Pallas kernels.
# ----------------------------------------------------------------------------
def init_params(key, img_x, img_y, fc_hidden1, fc_hidden2, embed_dim):
    ch1, ch2 = 32, 64
    eps = 1e-5
    keys = jax.random.split(key, 18)

    def conv_block(kw_, kb_, kg_, kbeta_, km_, kv_, co, ci, kh, kw):
        w = 0.1 * jax.random.normal(kw_, (co, ci, kh, kw), jnp.float32)
        b = 0.1 * jax.random.normal(kb_, (co,), jnp.float32)
        gamma = 1.0 + 0.1 * jax.random.normal(kg_, (co,), jnp.float32)
        beta = 0.1 * jax.random.normal(kbeta_, (co,), jnp.float32)
        mean = 0.1 * jax.random.normal(km_, (co,), jnp.float32)
        var = 0.5 + jnp.abs(jax.random.normal(kv_, (co,), jnp.float32))
        scale = gamma / jnp.sqrt(var + eps)
        bias = (b - mean) * scale + beta
        # (CO, CI, KH, KW) -> (KH*KW*CI, CO), matching im2col's (kh, kw, ci) order,
        # with the BN scale folded into the weight columns (exact in eval mode).
        w_mat = jnp.transpose(w, (2, 3, 1, 0)).reshape(kh * kw * ci, co)
        return w_mat * scale[None, :], bias

    w1, b1 = conv_block(*keys[0:6], ch1, 3, 5, 5)
    w2, b2 = conv_block(*keys[6:12], ch2, ch1, 3, 3)

    conv1_out = conv2d_output_size((img_x, img_y), (0, 0), (5, 5), (2, 2))
    conv2_out = conv2d_output_size(conv1_out, (0, 0), (3, 3), (2, 2))
    fc1_in = ch2 * conv2_out[0] * conv2_out[1]

    def linear(kw_, kb_, fin, fout):
        w = 0.1 * jax.random.normal(kw_, (fout, fin), jnp.float32)   # PyTorch (out,in)
        b = 0.1 * jax.random.normal(kb_, (fout,), jnp.float32)
        return w.T, b                                                # x @ W.T + b

    fc1_w, fc1_b = linear(keys[12], keys[13], fc1_in, fc_hidden1)
    fc2_w, fc2_b = linear(keys[14], keys[15], fc_hidden1, fc_hidden2)
    fc3_w, fc3_b = linear(keys[16], keys[17], fc_hidden2, embed_dim)

    return dict(w1=w1, b1=b1, w2=w2, b2=b2,
                fc1_w=fc1_w, fc1_b=fc1_b,
                fc2_w=fc2_w, fc2_b=fc2_b,
                fc3_w=fc3_w, fc3_b=fc3_b)


def _block_diag_weight(w_mat, kp, nc, g):
    """(K, nc) f32 conv weight -> (g*kp, 128) bf16 block-diagonal weight so that
    g consecutive im2col rows are computed by one lane-dense 128-wide matmul
    output row:  out[r, gi*nc + c] = sum_k cols[r*g + gi, k] * W[k, c]."""
    assert g * nc == 128
    k = w_mat.shape[0]
    w_np = np.asarray(w_mat, dtype=np.float32)
    wd = np.zeros((g * kp, g * nc), np.float32)
    for gi in range(g):
        wd[gi * kp:gi * kp + k, gi * nc:(gi + 1) * nc] = w_np
    return jnp.asarray(wd, dtype=jnp.bfloat16)


def prepare_params(raw, img_x, img_y):
    """One-time kernel-layout preparation (review item: no per-call pad/cast):
      * conv weights -> block-diagonal (G*Kp, 128) bf16 (lane-dense stores);
      * conv biases tiled G times across 128 lanes, f32;
      * NCHW->NHWC flatten permutation folded into fc1 rows;
      * all FC K/N padded to multiples of 128 and cast to bf16 once;
      * FC biases padded to (1, Np) f32."""
    ch1, ch2, c_in = 32, 64, 3
    conv1_out = conv2d_output_size((img_x, img_y), (0, 0), (5, 5), (2, 2))
    conv2_out = conv2d_output_size(conv1_out, (0, 0), (3, 3), (2, 2))

    kp1 = _round_up(5 * 5 * c_in, 128)
    kp2 = _round_up(3 * 3 * ch1, 128)
    g1, g2 = 128 // ch1, 128 // ch2

    w1 = _block_diag_weight(raw["w1"], kp1, ch1, g1)
    b1 = jnp.tile(raw["b1"], g1).reshape(1, 128).astype(jnp.float32)
    w2 = _block_diag_weight(raw["w2"], kp2, ch2, g2)
    b2 = jnp.tile(raw["b2"], g2).reshape(1, 128).astype(jnp.float32)

    # Fold the PyTorch NCHW flatten order into fc1_w rows so the kernel consumes
    # the conv2 output flattened directly in NHWC (h, w, c) order.
    oh2, ow2 = conv2_out
    perm = np.arange(ch2 * oh2 * ow2).reshape(ch2, oh2, ow2).transpose(1, 2, 0).reshape(-1)
    fc1_w = raw["fc1_w"][perm, :]

    def pad_w(w):
        kp = _round_up(w.shape[0], 128)
        npad = _round_up(w.shape[1], 128)
        return jnp.pad(w, ((0, kp - w.shape[0]), (0, npad - w.shape[1]))).astype(jnp.bfloat16)

    def pad_b(b):
        npad = _round_up(b.shape[0], 128)
        return jnp.pad(b, (0, npad - b.shape[0])).reshape(1, -1).astype(jnp.float32)

    return dict(
        w1=w1, b1=b1, w2=w2, b2=b2,
        fc1_w=pad_w(fc1_w), fc1_b=pad_b(raw["fc1_b"]),
        fc2_w=pad_w(raw["fc2_w"]), fc2_b=pad_b(raw["fc2_b"]),
        fc3_w=pad_w(raw["fc3_w"]), fc3_b=pad_b(raw["fc3_b"]),
    )


# ----------------------------------------------------------------------------
# Forward pass (eval mode).  All B*T frames processed together: one pallas_call
# per conv layer and one fused pallas_call for fc1->fc2->fc3.
# ----------------------------------------------------------------------------
@functools.partial(jax.jit, static_argnames=("embed_dim",))
def forward(params, x_3d, *, embed_dim):
    B, T, C, H, W = x_3d.shape
    BT = B * T
    ch1, ch2 = 32, 64

    # (B, T, C, H, W) -> (B*T, H, W, C) once, already in bf16 (MXU feed dtype).
    x = jnp.transpose(x_3d.reshape(BT, C, H, W), (0, 2, 3, 1)).astype(jnp.bfloat16)

    # conv1 + folded BN + ReLU  (im2col emitted K-padded in bf16).
    kp1 = params["w1"].shape[0] // (128 // ch1)
    cols1, (oh1, ow1) = im2col(x, 5, 5, 2, 2, k_target=kp1)
    y1 = conv_bn_relu(cols1, params["w1"], params["b1"], nc=ch1)   # (M1, 32) bf16
    x1 = y1.reshape(BT, oh1, ow1, ch1)

    # conv2 + folded BN + ReLU.
    kp2 = params["w2"].shape[0] // (128 // ch2)
    cols2, (oh2, ow2) = im2col(x1, 3, 3, 2, 2, k_target=kp2)
    y2 = conv_bn_relu(cols2, params["w2"], params["b2"], nc=ch2)   # (M2, 64) bf16

    # NHWC flatten; the NCHW permutation is baked into fc1_w's rows.
    flat = y2.reshape(BT, oh2 * ow2 * ch2)

    # fc1 -> relu -> fc2 -> relu -> dropout(eval: identity) -> fc3, fused.
    emb = mlp3(flat, params, embed_dim)
    return emb.reshape(B, T, embed_dim)                            # (B, T, embed) f32


# ----------------------------------------------------------------------------
# Pure-JAX float32 reference (same eval-mode semantics, PyTorch layouts).
# ----------------------------------------------------------------------------
def forward_reference(raw, x_3d):
    B, T, C, H, W = x_3d.shape
    x = jnp.transpose(x_3d.reshape(B * T, C, H, W), (0, 2, 3, 1))

    def conv(x, w_mat, b, kh, kw, s):
        cols, (oh, ow) = im2col(x, kh, kw, s, s)
        y = jnp.maximum(cols @ w_mat + b, 0.0)
        return y.reshape(B * T, oh, ow, w_mat.shape[1])

    x1 = conv(x, raw["w1"], raw["b1"], 5, 5, 2)
    x2 = conv(x1, raw["w2"], raw["b2"], 3, 3, 2)
    flat = jnp.transpose(x2, (0, 3, 1, 2)).reshape(B * T, -1)      # NCHW flatten
    h = jnp.maximum(flat @ raw["fc1_w"] + raw["fc1_b"], 0.0)
    h = jnp.maximum(h @ raw["fc2_w"] + raw["fc2_b"], 0.0)
    out = h @ raw["fc3_w"] + raw["fc3_b"]
    return out.reshape(B, T, -1)


if __name__ == "__main__":
    key = jax.random.PRNGKey(0)
    k_param, k_x = jax.random.split(key)

    # Small shapes consistent with the module: img 16x16, hidden 32, embed 16.
    B, T, C, H, W = 2, 3, 3, 16, 16
    FC1, FC2, EMBED = 32, 32, 16

    raw = init_params(k_param, H, W, FC1, FC2, EMBED)
    params = prepare_params(raw, H, W)           # one-time pad / cast / layout
    x_3d = jax.random.normal(k_x, (B, T, C, H, W), jnp.float32)

    out = forward(params, x_3d, embed_dim=EMBED)
    out = jax.block_until_ready(out)

    assert out.shape == (B, T, EMBED), out.shape
    assert out.dtype == jnp.float32
    assert bool(jnp.all(jnp.isfinite(out)))

    # Correctness vs. the float32 reference (bf16 MXU feeds => loose tolerance).
    ref = forward_reference(raw, x_3d)
    err = float(jnp.max(jnp.abs(out - ref)) / (jnp.max(jnp.abs(ref)) + 1e-6))
    assert err < 0.1, f"normalized max error too large: {err}"

    print("KERNEL_OK")
</pallas_src>

<mosaic_0001>
module attributes {stable_mosaic.version = 11 : i64} {
  func.func @_conv_gemm_kernel(%arg0: i32, %arg1: memref<32x512xbf16, #tpu.memory_space<vmem>>, %arg2: memref<512x128xbf16, #tpu.memory_space<vmem>>, %arg3: memref<1x128xf32, #tpu.memory_space<vmem>>, %arg4: memref<32x128xbf16, #tpu.memory_space<vmem>>) attributes {dimension_semantics = [#tpu.dimension_semantics<parallel>], iteration_bounds = array<i64: 2>, scalar_prefetch = 0 : i64, scratch_operands = 0 : i64, tpu.core_type = #tpu.core_type<tc>, window_params = [{transform_indices = @transform_0, window_bounds = array<i64: 32, 512>}, {pipeline_mode = #tpu.pipeline_mode<synchronous>, transform_indices = @transform_1, window_bounds = array<i64: 512, 128>}, {pipeline_mode = #tpu.pipeline_mode<synchronous>, transform_indices = @transform_2, window_bounds = array<i64: 1, 128>}, {transform_indices = @transform_3, window_bounds = array<i64: 32, 128>}]} {
    %c0 = arith.constant 0 : index
    %c0_0 = arith.constant 0 : index
    %0 = vector.load %arg1[%c0, %c0_0] : memref<32x512xbf16, #tpu.memory_space<vmem>>, vector<32x512xbf16>
    %c0_1 = arith.constant 0 : index
    %c0_2 = arith.constant 0 : index
    %1 = vector.load %arg2[%c0_1, %c0_2] : memref<512x128xbf16, #tpu.memory_space<vmem>>, vector<512x128xbf16>
    %cst = arith.constant dense<0.000000e+00> : vector<32x128xf32>
    %2 = tpu.matmul %0, %1, %cst {dimension_numbers = #tpu.dot_dimension_numbers<[1], [0], [0], [1], [0, 0, 1, 1], [], []>} : vector<32x512xbf16>, vector<512x128xbf16>, vector<32x128xf32> -> vector<32x128xf32>
    %c0_3 = arith.constant 0 : index
    %c0_4 = arith.constant 0 : index
    %3 = vector.load %arg3[%c0_3, %c0_4] : memref<1x128xf32, #tpu.memory_space<vmem>>, vector<1x128xf32>
    %4 = vector.broadcast %3 : vector<1x128xf32> to vector<32x128xf32>
    %5 = arith.addf %2, %4 : vector<32x128xf32>
    %cst_5 = arith.constant 0.000000e+00 : f32
    %6 = vector.broadcast %cst_5 : f32 to vector<32x128xf32>
    %7 = arith.maximumf %5, %6 : vector<32x128xf32>
    %8 = arith.truncf %7 : vector<32x128xf32> to vector<32x128xbf16>
    %c0_6 = arith.constant 0 : index
    %c0_7 = arith.constant 0 : index
    %9 = vector.load %arg4[%c0_6, %c0_7] : memref<32x128xbf16, #tpu.memory_space<vmem>>, vector<32x128xbf16>
    tpu.vector_store %arg4[%c0_6, %c0_7], %8 {strides = array<i32>} : memref<32x128xbf16, #tpu.memory_space<vmem>>, vector<32x128xbf16>,
    return
  }
  func.func @transform_0(%arg0: i32) -> (i32, i32) {
    %c0_i32 = arith.constant 0 : i32
    %c0_i32_0 = arith.constant 0 : i32
    return %arg0, %c0_i32 : i32, i32
  }
  func.func @transform_1(%arg0: i32) -> (i32, i32) {
    %c0_i32 = arith.constant 0 : i32
    %c0_i32_0 = arith.constant 0 : i32
    %c0_i32_1 = arith.constant 0 : i32
    return %c0_i32, %c0_i32_0 : i32, i32
  }
  func.func @transform_2(%arg0: i32) -> (i32, i32) {
    %c0_i32 = arith.constant 0 : i32
    %c0_i32_0 = arith.constant 0 : i32
    %c0_i32_1 = arith.constant 0 : i32
    return %c0_i32, %c0_i32_0 : i32, i32
  }
  func.func @transform_3(%arg0: i32) -> (i32, i32) {
    %c0_i32 = arith.constant 0 : i32
    %c0_i32_0 = arith.constant 0 : i32
    return %arg0, %c0_i32 : i32, i32
  }
}

module attributes {stable_mosaic.version = 11 : i64} {
  func.func @_conv_gemm_kernel(%arg0: i32, %arg1: memref<16x768xbf16, #tpu.memory_space<vmem>>, %arg2: memref<768x128xbf16, #tpu.memory_space<vmem>>, %arg3: memref<1x128xf32, #tpu.memory_space<vmem>>, %arg4: memref<16x128xbf16, #tpu.memory_space<vmem>>) attributes {dimension_semantics = [#tpu.dimension_semantics<parallel>], iteration_bounds = array<i64: 1>, scalar_prefetch = 0 : i64, scratch_operands = 0 : i64, tpu.core_type = #tpu.core_type<tc>, window_params = [{transform_indices = @transform_0, window_bounds = array<i64: 16, 768>}, {pipeline_mode = #tpu.pipeline_mode<synchronous>, transform_indices = @transform_1, window_bounds = array<i64: 768, 128>}, {pipeline_mode = #tpu.pipeline_mode<synchronous>, transform_indices = @transform_2, window_bounds = array<i64: 1, 128>}, {transform_indices = @transform_3, window_bounds = array<i64: 16, 128>}]} {
    %c0 = arith.constant 0 : index
    %c0_0 = arith.constant 0 : index
    %0 = vector.load %arg1[%c0, %c0_0] : memref<16x768xbf16, #tpu.memory_space<vmem>>, vector<16x768xbf16>
    %c0_1 = arith.constant 0 : index
    %c0_2 = arith.constant 0 : index
    %1 = vector.load %arg2[%c0_1, %c0_2] : memref<768x128xbf16, #tpu.memory_space<vmem>>, vector<768x128xbf16>
    %cst = arith.constant dense<0.000000e+00> : vector<16x128xf32>
    %2 = tpu.matmul %0, %1, %cst {dimension_numbers = #tpu.dot_dimension_numbers<[1], [0], [0], [1], [0, 0, 1, 1], [], []>} : vector<16x768xbf16>, vector<768x128xbf16>, vector<16x128xf32> -> vector<16x128xf32>
    %c0_3 = arith.constant 0 : index
    %c0_4 = arith.constant 0 : index
    %3 = vector.load %arg3[%c0_3, %c0_4] : memref<1x128xf32, #tpu.memory_space<vmem>>, vector<1x128xf32>
    %4 = vector.broadcast %3 : vector<1x128xf32> to vector<16x128xf32>
    %5 = arith.addf %2, %4 : vector<16x128xf32>
    %cst_5 = arith.constant 0.000000e+00 : f32
    %6 = vector.broadcast %cst_5 : f32 to vector<16x128xf32>
    %7 = arith.maximumf %5, %6 : vector<16x128xf32>
    %8 = arith.truncf %7 : vector<16x128xf32> to vector<16x128xbf16>
    %c0_6 = arith.constant 0 : index
    %c0_7 = arith.constant 0 : index
    %9 = vector.load %arg4[%c0_6, %c0_7] : memref<16x128xbf16, #tpu.memory_space<vmem>>, vector<16x128xbf16>
    tpu.vector_store %arg4[%c0_6, %c0_7], %8 {strides = array<i32>} : memref<16x128xbf16, #tpu.memory_space<vmem>>, vector<16x128xbf16>,
    return
  }
  func.func @transform_0(%arg0: i32) -> (i32, i32) {
    %c0_i32 = arith.constant 0 : i32
    %c0_i32_0 = arith.constant 0 : i32
    return %arg0, %c0_i32 : i32, i32
  }
  func.func @transform_1(%arg0: i32) -> (i32, i32) {
    %c0_i32 = arith.constant 0 : i32
    %c0_i32_0 = arith.constant 0 : i32
    %c0_i32_1 = arith.constant 0 : i32
    return %c0_i32, %c0_i32_0 : i32, i32
  }
  func.func @transform_2(%arg0: i32) -> (i32, i32) {
    %c0_i32 = arith.constant 0 : i32
    %c0_i32_0 = arith.constant 0 : i32
    %c0_i32_1 = arith.constant 0 : i32
    return %c0_i32, %c0_i32_0 : i32, i32
  }
  func.func @transform_3(%arg0: i32) -> (i32, i32) {
    %c0_i32 = arith.constant 0 : i32
    %c0_i32_0 = arith.constant 0 : i32
    return %arg0, %c0_i32 : i32, i32
  }
}

module attributes {stable_mosaic.version = 11 : i64} {
  func.func @_mlp3_kernel(%arg0: i32, %arg1: memref<16x256xbf16, #tpu.memory_space<vmem>>, %arg2: memref<256x128xbf16, #tpu.memory_space<vmem>>, %arg3: memref<1x128xf32, #tpu.memory_space<vmem>>, %arg4: memref<128x128xbf16, #tpu.memory_space<vmem>>, %arg5: memref<1x128xf32, #tpu.memory_space<vmem>>, %arg6: memref<128x128xbf16, #tpu.memory_space<vmem>>, %arg7: memref<1x128xf32, #tpu.memory_space<vmem>>, %arg8: memref<16x128xf32, #tpu.memory_space<vmem>>) attributes {dimension_semantics = [#tpu.dimension_semantics<parallel>], iteration_bounds = array<i64: 1>, scalar_prefetch = 0 : i64, scratch_operands = 0 : i64, tpu.core_type = #tpu.core_type<tc>, window_params = [{transform_indices = @transform_0, window_bounds = array<i64: 16, 256>}, {pipeline_mode = #tpu.pipeline_mode<synchronous>, transform_indices = @transform_1, window_bounds = array<i64: 256, 128>}, {pipeline_mode = #tpu.pipeline_mode<synchronous>, transform_indices = @transform_2, window_bounds = array<i64: 1, 128>}, {pipeline_mode = #tpu.pipeline_mode<synchronous>, transform_indices = @transform_3, window_bounds = array<i64: 128, 128>}, {pipeline_mode = #tpu.pipeline_mode<synchronous>, transform_indices = @transform_4, window_bounds = array<i64: 1, 128>}, {pipeline_mode = #tpu.pipeline_mode<synchronous>, transform_indices = @transform_5, window_bounds = array<i64: 128, 128>}, {pipeline_mode = #tpu.pipeline_mode<synchronous>, transform_indices = @transform_6, window_bounds = array<i64: 1, 128>}, {transform_indices = @transform_7, window_bounds = array<i64: 16, 128>}]} {
    %c0 = arith.constant 0 : index
    %c0_0 = arith.constant 0 : index
    %0 = vector.load %arg1[%c0, %c0_0] : memref<16x256xbf16, #tpu.memory_space<vmem>>, vector<16x256xbf16>
    %c0_1 = arith.constant 0 : index
    %c0_2 = arith.constant 0 : index
    %1 = vector.load %arg2[%c0_1, %c0_2] : memref<256x128xbf16, #tpu.memory_space<vmem>>, vector<256x128xbf16>
    %cst = arith.constant dense<0.000000e+00> : vector<16x128xf32>
    %2 = tpu.matmul %0, %1, %cst {dimension_numbers = #tpu.dot_dimension_numbers<[1], [0], [0], [1], [0, 0, 1, 1], [], []>} : vector<16x256xbf16>, vector<256x128xbf16>, vector<16x128xf32> -> vector<16x128xf32>
    %c0_3 = arith.constant 0 : index
    %c0_4 = arith.constant 0 : index
    %3 = vector.load %arg3[%c0_3, %c0_4] : memref<1x128xf32, #tpu.memory_space<vmem>>, vector<1x128xf32>
    %4 = vector.broadcast %3 : vector<1x128xf32> to vector<16x128xf32>
    %5 = arith.addf %2, %4 : vector<16x128xf32>
    %cst_5 = arith.constant 0.000000e+00 : f32
    %6 = vector.broadcast %cst_5 : f32 to vector<16x128xf32>
    %7 = arith.maximumf %5, %6 : vector<16x128xf32>
    %8 = arith.truncf %7 : vector<16x128xf32> to vector<16x128xbf16>
    %c0_6 = arith.constant 0 : index
    %c0_7 = arith.constant 0 : index
    %9 = vector.load %arg4[%c0_6, %c0_7] : memref<128x128xbf16, #tpu.memory_space<vmem>>, vector<128x128xbf16>
    %cst_8 = arith.constant dense<0.000000e+00> : vector<16x128xf32>
    %10 = tpu.matmul %8, %9, %cst_8 {dimension_numbers = #tpu.dot_dimension_numbers<[1], [0], [0], [1], [0, 0, 1, 1], [], []>} : vector<16x128xbf16>, vector<128x128xbf16>, vector<16x128xf32> -> vector<16x128xf32>
    %c0_9 = arith.constant 0 : index
    %c0_10 = arith.constant 0 : index
    %11 = vector.load %arg5[%c0_9, %c0_10] : memref<1x128xf32, #tpu.memory_space<vmem>>, vector<1x128xf32>
    %12 = vector.broadcast %11 : vector<1x128xf32> to vector<16x128xf32>
    %13 = arith.addf %10, %12 : vector<16x128xf32>
    %cst_11 = arith.constant 0.000000e+00 : f32
    %14 = vector.broadcast %cst_11 : f32 to vector<16x128xf32>
    %15 = arith.maximumf %13, %14 : vector<16x128xf32>
    %16 = arith.truncf %15 : vector<16x128xf32> to vector<16x128xbf16>
    %c0_12 = arith.constant 0 : index
    %c0_13 = arith.constant 0 : index
    %17 = vector.load %arg6[%c0_12, %c0_13] : memref<128x128xbf16, #tpu.memory_space<vmem>>, vector<128x128xbf16>
    %cst_14 = arith.constant dense<0.000000e+00> : vector<16x128xf32>
    %18 = tpu.matmul %16, %17, %cst_14 {dimension_numbers = #tpu.dot_dimension_numbers<[1], [0], [0], [1], [0, 0, 1, 1], [], []>} : vector<16x128xbf16>, vector<128x128xbf16>, vector<16x128xf32> -> vector<16x128xf32>
    %c0_15 = arith.constant 0 : index
    %c0_16 = arith.constant 0 : index
    %19 = vector.load %arg7[%c0_15, %c0_16] : memref<1x128xf32, #tpu.memory_space<vmem>>, vector<1x128xf32>
    %20 = vector.broadcast %19 : vector<1x128xf32> to vector<16x128xf32>
    %21 = arith.addf %18, %20 : vector<16x128xf32>
    %c0_17 = arith.constant 0 : index
    %c0_18 = arith.constant 0 : index
    %22 = vector.load %arg8[%c0_17, %c0_18] : memref<16x128xf32, #tpu.memory_space<vmem>>, vector<16x128xf32>
    tpu.vector_store %arg8[%c0_17, %c0_18], %21 {strides = array<i32>} : memref<16x128xf32, #tpu.memory_space<vmem>>, vector<16x128xf32>,
    return
  }
  func.func @transform_0(%arg0: i32) -> (i32, i32) {
    %c0_i32 = arith.constant 0 : i32
    %c0_i32_0 = arith.constant 0 : i32
    return %arg0, %c0_i32 : i32, i32
  }
  func.func @transform_1(%arg0: i32) -> (i32, i32) {
    %c0_i32 = arith.constant 0 : i32
    %c0_i32_0 = arith.constant 0 : i32
    %c0_i32_1 = arith.constant 0 : i32
    return %c0_i32, %c0_i32_0 : i32, i32
  }
  func.func @transform_2(%arg0: i32) -> (i32, i32) {
    %c0_i32 = arith.constant 0 : i32
    %c0_i32_0 = arith.constant 0 : i32
    %c0_i32_1 = arith.constant 0 : i32
    return %c0_i32, %c0_i32_0 : i32, i32
  }
  func.func @transform_3(%arg0: i32) -> (i32, i32) {
    %c0_i32 = arith.constant 0 : i32
    %c0_i32_0 = arith.constant 0 : i32
    %c0_i32_1 = arith.constant 0 : i32
    return %c0_i32, %c0_i32_0 : i32, i32
  }
  func.func @transform_4(%arg0: i32) -> (i32, i32) {
    %c0_i32 = arith.constant 0 : i32
    %c0_i32_0 = arith.constant 0 : i32
    %c0_i32_1 = arith.constant 0 : i32
    return %c0_i32, %c0_i32_0 : i32, i32
  }
  func.func @transform_5(%arg0: i32) -> (i32, i32) {
    %c0_i32 = arith.constant 0 : i32
    %c0_i32_0 = arith.constant 0 : i32
    %c0_i32_1 = arith.constant 0 : i32
    return %c0_i32, %c0_i32_0 : i32, i32
  }
  func.func @transform_6(%arg0: i32) -> (i32, i32) {
    %c0_i32 = arith.constant 0 : i32
    %c0_i32_0 = arith.constant 0 : i32
    %c0_i32_1 = arith.constant 0 : i32
    return %c0_i32, %c0_i32_0 : i32, i32
  }
  func.func @transform_7(%arg0: i32) -> (i32, i32) {
    %c0_i32 = arith.constant 0 : i32
    %c0_i32_0 = arith.constant 0 : i32
    return %arg0, %c0_i32 : i32, i32
  }
}

</mosaic_0001>

<llo_original>
// kernel: forward.3
$region0: #{forward.3}
  #allocation0 [shape = 'u32[]', space=smem, size = 0x4, offset = 0x4, fixed_abs, tag = 'smem constant byte address 0x4 - core index']
  #allocation1 [shape = 'u32[144,128]{1,0:T(1,128)}', space=vmem, size = 0x12000, scoped, tag = 'internal scratch']
  %s0 = inlined_call_operand.vmem [shape: bf16[64,512], index: 0, kind: input, shape index: {}]
  %s1 = inlined_call_operand.vmem [shape: bf16[512,128], index: 1, kind: input, shape index: {}]
  %s2 = inlined_call_operand.vmem [shape: f32[1,128], index: 2, kind: input, shape index: {}]
  %s3 = inlined_call_operand.vmem [shape: bf16[64,128], index: 3, kind: output, shape index: {}]
  %s4 = sld [smem:[#allocation0]]
  $region45: #{forward.3} parent=0
    _
  %s6 = ssub.s32 1, %s4
  %s7 = scalar_select 0, %s6, %s4
  loop: start=0, step=1, limit=4
  $region2: #{forward.3} parent=0 // loop_pre_header
    _
  $region3: #{forward.3} parent=0 // loop_header
    %s9 = sphi 0, %s13
    %p10 = scmp.ge.s32.totalorder %s9, 4
    %s19 = sphi 0, %s21
    %s22 = sphi 0, %s19
    %s23 = sphi 0, %s22
    %s39 = sphi 0, %s23
    %s43 = sphi 0, %s43
    %s45 = sphi 0, %s43
    %s46 = sphi 0, %s45
    %s60 = sphi 0, %s46
    %s64 = sphi 0, %s64
    %s66 = sphi 0, %s64
    %s67 = sphi 0, %s66
    %s81 = sphi 0, %s67
    %s87 = sphi 0, %s89
    %s90 = sphi 0, %s87
    %s91 = sphi 0, %s90
    %s107 = sphi 0, %s91
  $region4: #{forward.3} parent=0 // loop_header_branch
    %12 = sbr.rel (%p10) target = $region8
  $region5: #{forward.3} parent=0 // loop_body
    %s14 = ssub.s32 %s9, 1
    %s15 = ssub.s32 %s9, 2
    %s16 = sadd.s32 %s9, 1
    %s17 = ssub.s32 %s9, %s16
    %p18 = scmp.eq.s32.totalorder %s17, 0
    %s20 = sadd.s32 %s19, 1
    %s21 = scalar_select %p18, %s19, %s20
    %p24 = pneg %p18
    %p25 = scmp.eq.s32.totalorder %s9, 1
    %p26 = por %p24, %p25
    %p27 = scmp.ne.s32.totalorder %s19, %s22
    %p28 = scmp.eq.s32.totalorder %s9, 0
    %p29 = por %p27, %p28
    %p30 = scmp.ne.s32.totalorder %s19, %s22
    %p31 = scmp.eq.s32.totalorder %s14, 1
    %p32 = por %p30, %p31
    %p33 = scmp.ne.s32.totalorder %s22, %s23
    %p34 = scmp.eq.s32.totalorder %s14, 0
    %p35 = por %p33, %p34
    %p36 = scmp.ne.s32.totalorder %s22, %s23
    %p37 = scmp.eq.s32.totalorder %s15, 1
    %p38 = por %p36, %p37
    %p40 = scmp.ne.s32.totalorder %s23, %s39
    %p41 = scmp.eq.s32.totalorder %s15, 0
    %p42 = por %p40, %p41
    %s44 = sadd.s32 %s43, 1
    %p47 = scmp.eq.s32.totalorder %s9, 1
    %p48 = scmp.ne.s32.totalorder %s43, %s45
    %p49 = scmp.eq.s32.totalorder %s9, 0
    %p50 = por %p48, %p49
    %p51 = scmp.ne.s32.totalorder %s43, %s45
    %p52 = scmp.eq.s32.totalorder %s14, 1
    %p53 = por %p51, %p52
    %p54 = scmp.ne.s32.totalorder %s45, %s46
    %p55 = scmp.eq.s32.totalorder %s14, 0
    %p56 = por %p54, %p55
    %p57 = scmp.ne.s32.totalorder %s45, %s46
    %p58 = scmp.eq.s32.totalorder %s15, 1
    %p59 = por %p57, %p58
    %p61 = scmp.ne.s32.totalorder %s46, %s60
    %p62 = scmp.eq.s32.totalorder %s15, 0
    %p63 = por %p61, %p62
    %s65 = sadd.s32 %s64, 1
    %p68 = scmp.eq.s32.totalorder %s9, 1
    %p69 = scmp.ne.s32.totalorder %s64, %s66
    %p70 = scmp.eq.s32.totalorder %s9, 0
    %p71 = por %p69, %p70
    %p72 = scmp.ne.s32.totalorder %s64, %s66
    %p73 = scmp.eq.s32.totalorder %s14, 1
    %p74 = por %p72, %p73
    %p75 = scmp.ne.s32.totalorder %s66, %s67
    %p76 = scmp.eq.s32.totalorder %s14, 0
    %p77 = por %p75, %p76
    %p78 = scmp.ne.s32.totalorder %s66, %s67
    %p79 = scmp.eq.s32.totalorder %s15, 1
    %p80 = por %p78, %p79
    %p82 = scmp.ne.s32.totalorder %s67, %s81
    %p83 = scmp.eq.s32.totalorder %s15, 0
    %p84 = por %p82, %p83
    %s85 = ssub.s32 %s9, %s16
    %p86 = scmp.eq.s32.totalorder %s85, 0
    %s88 = sadd.s32 %s87, 1
    %s89 = scalar_select %p86, %s87, %s88
    %p92 = pneg %p86
    %p93 = scmp.eq.s32.totalorder %s9, 1
    %p94 = por %p92, %p93
    %p95 = scmp.ne.s32.totalorder %s87, %s90
    %p96 = scmp.eq.s32.totalorder %s9, 0
    %p97 = por %p95, %p96
    %p98 = scmp.ne.s32.totalorder %s87, %s90
    %p99 = scmp.eq.s32.totalorder %s14, 1
    %p100 = por %p98, %p99
    %p101 = scmp.ne.s32.totalorder %s90, %s91
    %p102 = scmp.eq.s32.totalorder %s14, 0
    %p103 = por %p101, %p102
    %p104 = scmp.ne.s32.totalorder %s90, %s91
    %p105 = scmp.eq.s32.totalorder %s15, 1
    %p106 = por %p104, %p105
    %p108 = scmp.ne.s32.totalorder %s91, %s107
    %p109 = scmp.eq.s32.totalorder %s15, 0
    %p110 = por %p108, %p109
    %p111 = scmp.le.s32.totalorder 1, %s9
    %p112 = scmp.lt.s32.totalorder %s9, 3
    %p113 = pnand %p111, %p112
    %p114 = pneg %p113
    // Predicated region
    $region9: #{forward.3} parent=5 // pred_check
      _
    $region10: #{forward.3} parent=5 // pred_check_branch
      %116 = sbr.rel (%p113) target = $region12
    $region11: #{forward.3} parent=5 // pred_region
      %s117 = ssub.s32 %s9, 1
      // Predicated region
      $region13: #{forward.3} parent=11 // pred_check
        %p118 = pneg %p56
      $region14: #{forward.3} parent=11 // pred_check_branch
        %120 = sbr.rel (%p118) target = $region16
      $region15: #{forward.3} parent=11 // pred_region
        _
      $region16: #{forward.3} parent=11 // pred_fallthru
        _
      // Predicated region
      $region17: #{forward.3} parent=11 // pred_check
        %p121 = pneg %p77
      $region18: #{forward.3} parent=11 // pred_check_branch
        %123 = sbr.rel (%p121) target = $region20
      $region19: #{forward.3} parent=11 // pred_region
        _
      $region20: #{forward.3} parent=11 // pred_fallthru
        _
    $region12: #{forward.3} parent=5 // pred_fallthru
      _
    %p124 = scmp.lt.s32.totalorder %s9, 2
    // Predicated region
    $region21: #{forward.3} parent=5 // pred_check
      %p125 = pneg %p124
    $region22: #{forward.3} parent=5 // pred_check_branch
      %127 = sbr.rel (%p125) target = $region24
    $region23: #{forward.3} parent=5 // pred_region
      // Predicated region
      $region25: #{forward.3} parent=23 // pred_check
        %p128 = pneg %p29
      $region26: #{forward.3} parent=23 // pred_check_branch
        %130 = sbr.rel (%p128) target = $region28
      $region27: #{forward.3} parent=23 // pred_region
        %s131 = smul.u32 4, %s9
        %p132 = scmp.lt.s32.totalorder %s131, 7
        %s133 = scalar_select %p132, %s131, 7
        %s134 = smul.addr %s133, 4
        %s135 = smul.addr %s134, 4
        %s136 = scalar_lea.vmem %s0, %s135
        %s137 = smul.u32 4, %s9
      $region28: #{forward.3} parent=23 // pred_fallthru
        _
    $region24: #{forward.3} parent=5 // pred_fallthru
      _
    %p138 = scmp.le.s32.totalorder 1, %s9
    %p139 = scmp.lt.s32.totalorder %s9, 3
    %p140 = pnand %p138, %p139
    %p141 = pneg %p140
    // Predicated region
    $region29: #{forward.3} parent=5 // pred_check
      _
    $region30: #{forward.3} parent=5 // pred_check_branch
      %143 = sbr.rel (%p140) target = $region32
    $region31: #{forward.3} parent=5 // pred_region
      %s144 = ssub.s32 %s9, 1
      %s145 = smul.u32 4, %s14
      %p146 = scmp.lt.s32.totalorder %s145, 7
      %s147 = scalar_select %p146, %s145, 7
      %s148 = smul.addr %s147, 4
      %s149 = smul.addr %s148, 4
      %s150 = scalar_lea.vmem %s0, %s149
      %p151 = pneg %p35
      %p152 = pneg %p32
      %p153 = pneg %p56
      %p154 = pneg %p53
      %p155 = pneg %p77
      %p156 = pneg %p74
      %p157 = pneg %p103
      %p158 = pneg %p100
      %s159 = smul.u32 4, %s14
      %p160 = scmp.lt.s32.totalorder %s159, 7
      %s161 = scalar_select %p160, %s159, 7
      %s162 = smul.addr %s161, 4
      %s163 = scalar_lea.vmem %s3, %s162
      %s164 = smul.u32 4, %s14
      %p165 = scmp.lt.s32.totalorder %s164, 7
      %s166 = scalar_select %p165, %s164, 7
      %s167 = smul.addr %s166, 4
      %s168 = smul.addr %s167, 4
      %s169 = scalar_lea.vmem %s0, %s168
      %s170 = smul.u32 4, %s14
      %s171 = smul.u32 4, %s14
      %p172 = scmp.lt.s32.totalorder %s171, 7
      %s173 = scalar_select %p172, %s171, 7
      %s174 = smul.addr %s173, 4
      %s175 = scalar_lea.vmem %s3, %s174
      %s176 = smul.u32 4, %s14
      %v178 = vld [vmem:[%s169] sm:$0xff]
      %v179 = vld [vmem:[%s169 + $0x8] sm:$0xff]
      %v180 = vld [vmem:[%s169 + $0x10] sm:$0xff]
      %v181 = vld [vmem:[%s169 + $0x18] sm:$0xff]
      %v182 = vld [vmem:[%s169 + $0x20] sm:$0xff]
      %v183 = vld [vmem:[%s169 + $0x28] sm:$0xff]
      %v184 = vld [vmem:[%s169 + $0x30] sm:$0xff]
      %v185 = vld [vmem:[%s169 + $0x38] sm:$0xff]
      %v186 = vld [vmem:[%s1] sm:$0xf]
      %v187 = vld [vmem:[%s1 + $0x4] sm:$0xf]
      %v188 = vld [vmem:[%s1 + $0x8] sm:$0xf]
      %v189 = vld [vmem:[%s1 + $0xc] sm:$0xf]
      %v190 = vld [vmem:[%s1 + $0x10] sm:$0xf]
      %v191 = vld [vmem:[%s1 + $0x14] sm:$0xf]
      %v192 = vld [vmem:[%s1 + $0x18] sm:$0xf]
      %v193 = vld [vmem:[%s1 + $0x1c] sm:$0xf]
      %v194 = vld [vmem:[%s1 + $0x20] sm:$0xf]
      %v195 = vld [vmem:[%s1 + $0x24] sm:$0xf]
      %v196 = vld [vmem:[%s1 + $0x28] sm:$0xf]
      %v197 = vld [vmem:[%s1 + $0x2c] sm:$0xf]
      %v198 = vld [vmem:[%s1 + $0x30] sm:$0xf]
      %v199 = vld [vmem:[%s1 + $0x34] sm:$0xf]
      %v200 = vld [vmem:[%s1 + $0x38] sm:$0xf]
      %v201 = vld [vmem:[%s1 + $0x3c] sm:$0xf]
      %v202 = vld [vmem:[%s1 + $0x40] sm:$0xf]
      %v203 = vld [vmem:[%s1 + $0x44] sm:$0xf]
      %v204 = vld [vmem:[%s1 + $0x48] sm:$0xf]
      %v205 = vld [vmem:[%s1 + $0x4c] sm:$0xf]
      %v206 = vld [vmem:[%s1 + $0x50] sm:$0xf]
      %v207 = vld [vmem:[%s1 + $0x54] sm:$0xf]
      %v208 = vld [vmem:[%s1 + $0x58] sm:$0xf]
      %v209 = vld [vmem:[%s1 + $0x5c] sm:$0xf]
      %v210 = vld [vmem:[%s1 + $0x60] sm:$0xf]
      %v211 = vld [vmem:[%s1 + $0x64] sm:$0xf]
      %v212 = vld [vmem:[%s1 + $0x68] sm:$0xf]
      %v213 = vld [vmem:[%s1 + $0x6c] sm:$0xf]
      %v214 = vld [vmem:[%s1 + $0x70] sm:$0xf]
      %v215 = vld [vmem:[%s1 + $0x74] sm:$0xf]
      %v216 = vld [vmem:[%s1 + $0x78] sm:$0xf]
      %v217 = vld [vmem:[%s1 + $0x7c] sm:$0xf]
      %v218 = vld [vmem:[%s1 + $0x80] sm:$0xf]
      %v219 = vld [vmem:[%s1 + $0x84] sm:$0xf]
      %v220 = vld [vmem:[%s1 + $0x88] sm:$0xf]
      %v221 = vld [vmem:[%s1 + $0x8c] sm:$0xf]
      %v222 = vld [vmem:[%s1 + $0x90] sm:$0xf]
      %v223 = vld [vmem:[%s1 + $0x94] sm:$0xf]
      %v224 = vld [vmem:[%s1 + $0x98] sm:$0xf]
      %v225 = vld [vmem:[%s1 + $0x9c] sm:$0xf]
      %v226 = vld [vmem:[%s1 + $0xa0] sm:$0xf]
      %v227 = vld [vmem:[%s1 + $0xa4] sm:$0xf]
      %v228 = vld [vmem:[%s1 + $0xa8] sm:$0xf]
      %v229 = vld [vmem:[%s1 + $0xac] sm:$0xf]
      %v230 = vld [vmem:[%s1 + $0xb0] sm:$0xf]
      %v231 = vld [vmem:[%s1 + $0xb4] sm:$0xf]
      %v232 = vld [vmem:[%s1 + $0xb8] sm:$0xf]
      %v233 = vld [vmem:[%s1 + $0xbc] sm:$0xf]
      %v234 = vld [vmem:[%s1 + $0xc0] sm:$0xf]
      %v235 = vld [vmem:[%s1 + $0xc4] sm:$0xf]
      %v236 = vld [vmem:[%s1 + $0xc8] sm:$0xf]
      %v237 = vld [vmem:[%s1 + $0xcc] sm:$0xf]
      %v238 = vld [vmem:[%s1 + $0xd0] sm:$0xf]
      %v239 = vld [vmem:[%s1 + $0xd4] sm:$0xf]
      %v240 = vld [vmem:[%s1 + $0xd8] sm:$0xf]
      %v241 = vld [vmem:[%s1 + $0xdc] sm:$0xf]
      %v242 = vld [vmem:[%s1 + $0xe0] sm:$0xf]
      %v243 = vld [vmem:[%s1 + $0xe4] sm:$0xf]
      %v244 = vld [vmem:[%s1 + $0xe8] sm:$0xf]
      %v245 = vld [vmem:[%s1 + $0xec] sm:$0xf]
      %v246 = vld [vmem:[%s1 + $0xf0] sm:$0xf]
      %v247 = vld [vmem:[%s1 + $0xf4] sm:$0xf]
      %v248 = vld [vmem:[%s1 + $0xf8] sm:$0xf]
      %v249 = vld [vmem:[%s1 + $0xfc] sm:$0xf]
      %v250 = vld [vmem:[%s2] sm:$0x1]
      %v252 = vlaneseq
      %v253 = vshrl.u32 %v252, 7
      %v254 = vsub.s32 0, %v253
      %v255 = vrot.slane %v250, %v254
      %v265 = vunpack.c.l.b16 %v178
      %v266 = vunpack.c.h.b16 %v178
      %v267 = vunpack.c.l.b16 %v179
      %v268 = vunpack.c.h.b16 %v179
      %v269 = vunpack.c.l.b16 %v180
      %v270 = vunpack.c.h.b16 %v180
      %v271 = vunpack.c.l.b16 %v181
      %v272 = vunpack.c.h.b16 %v181
      %v273 = vunpack.c.l.b16 %v182
      %v274 = vunpack.c.h.b16 %v182
      %v275 = vunpack.c.l.b16 %v183
      %v276 = vunpack.c.h.b16 %v183
      %v277 = vunpack.c.l.b16 %v184
      %v278 = vunpack.c.h.b16 %v184
      %v279 = vunpack.c.l.b16 %v185
      %v280 = vunpack.c.h.b16 %v185
      %v281 = vpack.c.b16 %v269, %v265
      %v282 = vpack.c.b16 %v270, %v266
      %v283 = vpack.c.b16 %v271, %v267
      %v284 = vpack.c.b16 %v272, %v268
      %v285 = vpack.c.b16 %v277, %v273
      %v286 = vpack.c.b16 %v278, %v274
      %v287 = vpack.c.b16 %v279, %v275
      %v288 = vpack.c.b16 %v280, %v276
      %v361 = vunpack.c.l.b16 %v186
      %v362 = vunpack.c.l.b16 %v187
      %v363 = vunpack.c.l.b16 %v188
      %v364 = vunpack.c.l.b16 %v189
      %v365 = vunpack.c.l.b16 %v190
      %v366 = vunpack.c.l.b16 %v191
      %v367 = vunpack.c.l.b16 %v192
      %v368 = vunpack.c.l.b16 %v193
      %v369 = vunpack.c.l.b16 %v194
      %v370 = vunpack.c.l.b16 %v195
      %v371 = vunpack.c.l.b16 %v196
      %v372 = vunpack.c.l.b16 %v197
      %v373 = vunpack.c.l.b16 %v198
      %v374 = vunpack.c.l.b16 %v199
      %v375 = vunpack.c.l.b16 %v200
      %v376 = vunpack.c.l.b16 %v201
      %v377 = vunpack.c.l.b16 %v202
      %v378 = vunpack.c.l.b16 %v203
      %v379 = vunpack.c.l.b16 %v204
      %v380 = vunpack.c.l.b16 %v205
      %v381 = vunpack.c.l.b16 %v206
      %v382 = vunpack.c.l.b16 %v207
      %v383 = vunpack.c.l.b16 %v208
      %v384 = vunpack.c.l.b16 %v209
      %v385 = vunpack.c.l.b16 %v210
      %v386 = vunpack.c.l.b16 %v211
      %v387 = vunpack.c.l.b16 %v212
      %v388 = vunpack.c.l.b16 %v213
      %v389 = vunpack.c.l.b16 %v214
      %v390 = vunpack.c.l.b16 %v215
      %v391 = vunpack.c.l.b16 %v216
      %v392 = vunpack.c.l.b16 %v217
      %v393 = vunpack.c.l.b16 %v218
      %v394 = vunpack.c.l.b16 %v219
      %v395 = vunpack.c.l.b16 %v220
      %v396 = vunpack.c.l.b16 %v221
      %v397 = vunpack.c.l.b16 %v222
      %v398 = vunpack.c.l.b16 %v223
      %v399 = vunpack.c.l.b16 %v224
      %v400 = vunpack.c.l.b16 %v225
      %v401 = vunpack.c.l.b16 %v226
      %v402 = vunpack.c.l.b16 %v227
      %v403 = vunpack.c.l.b16 %v228
      %v404 = vunpack.c.l.b16 %v229
      %v405 = vunpack.c.l.b16 %v230
      %v406 = vunpack.c.l.b16 %v231
      %v407 = vunpack.c.l.b16 %v232
      %v408 = vunpack.c.l.b16 %v233
      %v409 = vunpack.c.l.b16 %v234
      %v410 = vunpack.c.l.b16 %v235
      %v411 = vunpack.c.l.b16 %v236
      %v412 = vunpack.c.l.b16 %v237
      %v413 = vunpack.c.l.b16 %v238
      %v414 = vunpack.c.l.b16 %v239
      %v415 = vunpack.c.l.b16 %v240
      %v416 = vunpack.c.l.b16 %v241
      %v417 = vunpack.c.l.b16 %v242
      %v418 = vunpack.c.l.b16 %v243
      %v419 = vunpack.c.l.b16 %v244
      %v420 = vunpack.c.l.b16 %v245
      %v421 = vunpack.c.l.b16 %v246
      %v422 = vunpack.c.l.b16 %v247
      %v423 = vunpack.c.l.b16 %v248
      %v424 = vunpack.c.l.b16 %v249
      %v425 = vpack.c.b16 %v362, %v361
      %v426 = vpack.c.b16 %v364, %v363
      %v427 = vpack.c.b16 %v366, %v365
      %v428 = vpack.c.b16 %v368, %v367
      %v429 = vpack.c.b16 %v370, %v369
      %v430 = vpack.c.b16 %v372, %v371
      %v431 = vpack.c.b16 %v374, %v373
      %v432 = vpack.c.b16 %v376, %v375
      %v433 = vpack.c.b16 %v378, %v377
      %v434 = vpack.c.b16 %v380, %v379
      %v435 = vpack.c.b16 %v382, %v381
      %v436 = vpack.c.b16 %v384, %v383
      %v437 = vpack.c.b16 %v386, %v385
      %v438 = vpack.c.b16 %v388, %v387
      %v439 = vpack.c.b16 %v390, %v389
      %v440 = vpack.c.b16 %v392, %v391
      %v441 = vpack.c.b16 %v394, %v393
      %v442 = vpack.c.b16 %v396, %v395
      %v443 = vpack.c.b16 %v398, %v397
      %v444 = vpack.c.b16 %v400, %v399
      %v445 = vpack.c.b16 %v402, %v401
      %v446 = vpack.c.b16 %v404, %v403
      %v447 = vpack.c.b16 %v406, %v405
      %v448 = vpack.c.b16 %v408, %v407
      %v449 = vpack.c.b16 %v410, %v409
      %v450 = vpack.c.b16 %v412, %v411
      %v451 = vpack.c.b16 %v414, %v413
      %v452 = vpack.c.b16 %v416, %v415
      %v453 = vpack.c.b16 %v418, %v417
      %v454 = vpack.c.b16 %v420, %v419
      %v455 = vpack.c.b16 %v422, %v421
      %v456 = vpack.c.b16 %v424, %v423
      %489 = vmatprep.subr.bf16.mxu0 0
      %490 = vmatpush1.bf16.msra.mxu0 %v432
      %491 = vmatprep.subr.bf16.mxu0 0
      %492 = vmatpush1.bf16.msra.mxu0 %v431
      %493 = vmatprep.subr.bf16.mxu0 0
      %494 = vmatpush1.bf16.msra.mxu0 %v430
      %495 = vmatprep.subr.bf16.mxu0 0
      %496 = vmatpush1.bf16.msra.mxu0 %v429
      %497 = vmatprep.subr.bf16.mxu0 0
      %498 = vmatpush1.bf16.msra.mxu0 %v428
      %499 = vmatprep.subr.bf16.mxu0 0
      %500 = vmatpush1.bf16.msra.mxu0 %v427
      %501 = vmatprep.subr.bf16.mxu0 0
      %502 = vmatpush1.bf16.msra.mxu0 %v426
      %503 = vmatprep.subr.bf16.mxu0 0
      %504 = vmatpush1.bf16.msra.mxu0 %v425
      %505 = vmatprep.subr.bf16.mxu0 0
      %506 = vmatpush2.bf16.msra.mxu0 %v440
      %507 = vmatprep.subr.bf16.mxu0 0
      %508 = vmatpush2.bf16.msra.mxu0 %v439
      %509 = vmatprep.subr.bf16.mxu0 0
      %510 = vmatpush2.bf16.msra.mxu0 %v438
      %511 = vmatprep.subr.bf16.mxu0 0
      %512 = vmatpush2.bf16.msra.mxu0 %v437
      %513 = vmatprep.subr.bf16.mxu0 0
      %514 = vmatpush2.bf16.msra.mxu0 %v436
      %515 = vmatprep.subr.bf16.mxu0 0
      %516 = vmatpush2.bf16.msra.mxu0 %v435
      %517 = vmatprep.subr.bf16.mxu0 0
      %518 = vmatpush2.bf16.msra.mxu0 %v434
      %519 = vmatprep.subr.bf16.mxu0 0
      %520 = vmatpush2.bf16.msra.mxu0 %v433
      %521 = vmatprep.mubr.bf16.mxu0 %v282
      %522 = vmatmul.mubr.bf16.gmra.mxu0 %v281
      %v523 = vpop.f32.mrf.mxu0
      %v524 = vadd.f32 %v255, %v523
      %v525 = vpop.f32.mrf.mxu0
      %v526 = vpop.f32.mrf.mxu0
      %v527 = vadd.f32 %v255, %v526
      %v528 = vpop.f32.mrf.mxu0
      %529 = vmatprep.mubr.bf16.mxu0 %v286
      %530 = vmatmul.mubr.bf16.gmra.mxu0 %v285
      %v531 = vpop.f32.mrf.mxu0
      %v532 = vadd.f32 %v255, %v531
      %v533 = vpop.f32.mrf.mxu0
      %v534 = vpop.f32.mrf.mxu0
      %v535 = vadd.f32 %v255, %v534
      %v536 = vpop.f32.mrf.mxu0
      %537 = vdwg.mxu0
      %538 = vmatprep.subr.bf16.mxu0 0
      %539 = vmatpush1.bf16.msra.mxu0 %v448
      %540 = vmatprep.subr.bf16.mxu0 0
      %541 = vmatpush1.bf16.msra.mxu0 %v447
      %542 = vmatprep.subr.bf16.mxu0 0
      %543 = vmatpush1.bf16.msra.mxu0 %v446
      %544 = vmatprep.subr.bf16.mxu0 0
      %545 = vmatpush1.bf16.msra.mxu0 %v445
      %546 = vmatprep.subr.bf16.mxu0 0
      %547 = vmatpush1.bf16.msra.mxu0 %v444
      %548 = vmatprep.subr.bf16.mxu0 0
      %549 = vmatpush1.bf16.msra.mxu0 %v443
      %550 = vmatprep.subr.bf16.mxu0 0
      %551 = vmatpush1.bf16.msra.mxu0 %v442
      %552 = vmatprep.subr.bf16.mxu0 0
      %553 = vmatpush1.bf16.msra.mxu0 %v441
      %554 = vmatprep.subr.bf16.mxu0 0
      %555 = vmatpush2.bf16.msra.mxu0 %v456
      %556 = vmatprep.subr.bf16.mxu0 0
      %557 = vmatpush2.bf16.msra.mxu0 %v455
      %558 = vmatprep.subr.bf16.mxu0 0
      %559 = vmatpush2.bf16.msra.mxu0 %v454
      %560 = vmatprep.subr.bf16.mxu0 0
      %561 = vmatpush2.bf16.msra.mxu0 %v453
      %562 = vmatprep.subr.bf16.mxu0 0
      %563 = vmatpush2.bf16.msra.mxu0 %v452
      %564 = vmatprep.subr.bf16.mxu0 0
      %565 = vmatpush2.bf16.msra.mxu0 %v451
      %566 = vmatprep.subr.bf16.mxu0 0
      %567 = vmatpush2.bf16.msra.mxu0 %v450
      %568 = vmatprep.subr.bf16.mxu0 0
      %569 = vmatpush2.bf16.msra.mxu0 %v449
      %570 = vmatprep.mubr.bf16.mxu0 %v284
      %571 = vmatmul.mubr.bf16.gmra.mxu0 %v283
      %v572 = vpop.f32.mrf.mxu0
      %v573 = vadd.f32 %v524, %v572
      %v574 = vpop.f32.mrf.mxu0
      %v575 = vpop.f32.mrf.mxu0
      %v576 = vadd.f32 %v527, %v575
      %v577 = vpop.f32.mrf.mxu0
      %578 = vmatprep.mubr.bf16.mxu0 %v288
      %579 = vmatmul.mubr.bf16.gmra.mxu0 %v287
      %v580 = vpop.f32.mrf.mxu0
      %v581 = vadd.f32 %v532, %v580
      %v582 = vpop.f32.mrf.mxu0
      %v583 = vpop.f32.mrf.mxu0
      %v584 = vadd.f32 %v535, %v583
      %v585 = vpop.f32.mrf.mxu0
      %586 = vdwg.mxu0
      %v587 = vmax.f32 %v573, 0.0
      %v588 = vmax.f32 %v576, 0.0
      %v589 = vmax.f32 %v581, 0.0
      %v590 = vmax.f32 %v584, 0.0
      %v591 = vpack.c.bf16 %v588, %v587
      %v592 = vpack.c.bf16 %v590, %v589
      %v595 = vunpack.c.l.b16 %v591
      %v596 = vunpack.c.h.b16 %v591
      %v597 = vunpack.c.l.b16 %v592
      %v598 = vunpack.c.h.b16 %v592
      %v599 = vpack.c.b16 %v595, %v595
      %v600 = vpack.c.b16 %v596, %v596
      %v601 = vpack.c.b16 %v597, %v597
      %v602 = vpack.c.b16 %v598, %v598
      %607 = vst [vmem:[%s175] sm:$0xf] %v599
      %608 = vst [vmem:[%s175 + $0x4] sm:$0xf] %v600
      %609 = vst [vmem:[%s175 + $0x8] sm:$0xf] %v601
      %610 = vst [vmem:[%s175 + $0xc] sm:$0xf] %v602
      %s611 = smul.u32 4, %s14
      %p612 = scmp.lt.s32.totalorder %s611, 7
      %s613 = scalar_select %p612, %s611, 7
      %s614 = smul.addr %s613, 4
      %s615 = scalar_lea.vmem %s3, %s614
      // Predicated region
      $region33: #{forward.3} parent=31 // pred_check
        %p616 = pneg %p100
      $region34: #{forward.3} parent=31 // pred_check_branch
        %618 = sbr.rel (%p616) target = $region36
      $region35: #{forward.3} parent=31 // pred_region
        %s619 = smul.u32 4, %s14
      $region36: #{forward.3} parent=31 // pred_fallthru
        _
    $region32: #{forward.3} parent=5 // pred_fallthru
      _
    %p620 = scmp.le.s32.totalorder 2, %s9
    // Predicated region
    $region37: #{forward.3} parent=5 // pred_check
      %p621 = pneg %p620
    $region38: #{forward.3} parent=5 // pred_check_branch
      %623 = sbr.rel (%p621) target = $region40
    $region39: #{forward.3} parent=5 // pred_region
      %s624 = ssub.s32 %s9, 2
      // Predicated region
      $region41: #{forward.3} parent=39 // pred_check
        %p625 = pneg %p106
      $region42: #{forward.3} parent=39 // pred_check_branch
        %627 = sbr.rel (%p625) target = $region44
      $region43: #{forward.3} parent=39 // pred_region
        %s628 = smul.u32 4, %s15
        %p629 = scmp.lt.s32.totalorder %s628, 7
        %s630 = scalar_select %p629, %s628, 7
        %s631 = smul.addr %s630, 4
        %s632 = scalar_lea.vmem %s3, %s631
      $region44: #{forward.3} parent=39 // pred_fallthru
        _
    $region40: #{forward.3} parent=5 // pred_fallthru
      _
  $region6: #{forward.3} parent=0 // loop_footer
    %s13 = sadd.s32 1, %s9
  $region7: #{forward.3} parent=0 // loop_footer_branch
    %8 = sbr.rel target = $region3
  $region8: #{forward.3} parent=0 // loop_exit
    _

// kernel: forward.5
$region0: #{forward.5}
  #allocation0 [shape = 'u32[]', space=smem, size = 0x4, offset = 0x4, fixed_abs, tag = 'smem constant byte address 0x4 - core index']
  #allocation1 [shape = 'u32[144,128]{1,0:T(1,128)}', space=vmem, size = 0x12000, scoped, tag = 'internal scratch']
  %s0 = inlined_call_operand.vmem [shape: bf16[16,256], index: 0, kind: input, shape index: {}]
  %s1 = inlined_call_operand.vmem [shape: bf16[256,128], index: 1, kind: input, shape index: {}]
  %s2 = inlined_call_operand.vmem [shape: f32[1,128], index: 2, kind: input, shape index: {}]
  %s3 = inlined_call_operand.vmem [shape: bf16[128,128], index: 3, kind: input, shape index: {}]
  %s4 = inlined_call_operand.vmem [shape: f32[1,128], index: 4, kind: input, shape index: {}]
  %s5 = inlined_call_operand.vmem [shape: bf16[128,128], index: 5, kind: input, shape index: {}]
  %s6 = inlined_call_operand.vmem [shape: f32[1,128], index: 6, kind: input, shape index: {}]
  %s7 = inlined_call_operand.vmem [shape: f32[16,128], index: 7, kind: output, shape index: {}]
  %s8 = sld [smem:[#allocation0]]
  $region38: #{forward.5} parent=0
    _
  %s10 = ssub.s32 1, %s8
  %s11 = scalar_select 0, %s10, %s8
  // Predicated region
  $region2: #{forward.5} parent=0 // pred_check
    _
  $region3: #{forward.5} parent=0 // pred_check_branch
    %13 = sbr.rel (0) target = $region5
  $region4: #{forward.5} parent=0 // pred_region
    _
  $region5: #{forward.5} parent=0 // pred_fallthru
    _
  // Predicated region
  $region6: #{forward.5} parent=0 // pred_check
    _
  $region7: #{forward.5} parent=0 // pred_check_branch
    %15 = sbr.rel (0) target = $region9
  $region8: #{forward.5} parent=0 // pred_region
    _
  $region9: #{forward.5} parent=0 // pred_fallthru
    _
  // Predicated region
  $region10: #{forward.5} parent=0 // pred_check
    _
  $region11: #{forward.5} parent=0 // pred_check_branch
    %17 = sbr.rel (0) target = $region13
  $region12: #{forward.5} parent=0 // pred_region
    _
  $region13: #{forward.5} parent=0 // pred_fallthru
    _
  // Predicated region
  $region14: #{forward.5} parent=0 // pred_check
    _
  $region15: #{forward.5} parent=0 // pred_check_branch
    %19 = sbr.rel (0) target = $region17
  $region16: #{forward.5} parent=0 // pred_region
    _
  $region17: #{forward.5} parent=0 // pred_fallthru
    _
  // Predicated region
  $region18: #{forward.5} parent=0 // pred_check
    _
  $region19: #{forward.5} parent=0 // pred_check_branch
    %21 = sbr.rel (0) target = $region21
  $region20: #{forward.5} parent=0 // pred_region
    _
  $region21: #{forward.5} parent=0 // pred_fallthru
    _
  // Predicated region
  $region22: #{forward.5} parent=0 // pred_check
    _
  $region23: #{forward.5} parent=0 // pred_check_branch
    %23 = sbr.rel (0) target = $region25
  $region24: #{forward.5} parent=0 // pred_region
    _
  $region25: #{forward.5} parent=0 // pred_fallthru
    _
  // Predicated region
  $region26: #{forward.5} parent=0 // pred_check
    _
  $region27: #{forward.5} parent=0 // pred_check_branch
    %25 = sbr.rel (0) target = $region29
  $region28: #{forward.5} parent=0 // pred_region
    _
  $region29: #{forward.5} parent=0 // pred_fallthru
    _
  %v27 = vld [vmem:[%s0] sm:$0xff]
  %v28 = vld [vmem:[%s0 + $0x8] sm:$0xff]
  %v29 = vld [vmem:[%s1] sm:$0xf]
  %v30 = vld [vmem:[%s1 + $0x4] sm:$0xf]
  %v31 = vld [vmem:[%s1 + $0x8] sm:$0xf]
  %v32 = vld [vmem:[%s1 + $0xc] sm:$0xf]
  %v33 = vld [vmem:[%s1 + $0x10] sm:$0xf]
  %v34 = vld [vmem:[%s1 + $0x14] sm:$0xf]
  %v35 = vld [vmem:[%s1 + $0x18] sm:$0xf]
  %v36 = vld [vmem:[%s1 + $0x1c] sm:$0xf]
  %v37 = vld [vmem:[%s1 + $0x20] sm:$0xf]
  %v38 = vld [vmem:[%s1 + $0x24] sm:$0xf]
  %v39 = vld [vmem:[%s1 + $0x28] sm:$0xf]
  %v40 = vld [vmem:[%s1 + $0x2c] sm:$0xf]
  %v41 = vld [vmem:[%s1 + $0x30] sm:$0xf]
  %v42 = vld [vmem:[%s1 + $0x34] sm:$0xf]
  %v43 = vld [vmem:[%s1 + $0x38] sm:$0xf]
  %v44 = vld [vmem:[%s1 + $0x3c] sm:$0xf]
  %v45 = vld [vmem:[%s1 + $0x40] sm:$0xf]
  %v46 = vld [vmem:[%s1 + $0x44] sm:$0xf]
  %v47 = vld [vmem:[%s1 + $0x48] sm:$0xf]
  %v48 = vld [vmem:[%s1 + $0x4c] sm:$0xf]
  %v49 = vld [vmem:[%s1 + $0x50] sm:$0xf]
  %v50 = vld [vmem:[%s1 + $0x54] sm:$0xf]
  %v51 = vld [vmem:[%s1 + $0x58] sm:$0xf]
  %v52 = vld [vmem:[%s1 + $0x5c] sm:$0xf]
  %v53 = vld [vmem:[%s1 + $0x60] sm:$0xf]
  %v54 = vld [vmem:[%s1 + $0x64] sm:$0xf]
  %v55 = vld [vmem:[%s1 + $0x68] sm:$0xf]
  %v56 = vld [vmem:[%s1 + $0x6c] sm:$0xf]
  %v57 = vld [vmem:[%s1 + $0x70] sm:$0xf]
  %v58 = vld [vmem:[%s1 + $0x74] sm:$0xf]
  %v59 = vld [vmem:[%s1 + $0x78] sm:$0xf]
  %v60 = vld [vmem:[%s1 + $0x7c] sm:$0xf]
  %v61 = vld [vmem:[%s2] sm:$0x1]
  %v63 = vlaneseq
  %v64 = vshrl.u32 %v63, 7
  %v65 = vsub.s32 0, %v64
  %v66 = vrot.slane %v61, %v65
  %v70 = vunpack.c.l.b16 %v27
  %v71 = vunpack.c.h.b16 %v27
  %v72 = vunpack.c.l.b16 %v28
  %v73 = vunpack.c.h.b16 %v28
  %v74 = vpack.c.b16 %v72, %v70
  %v75 = vpack.c.b16 %v73, %v71
  %v110 = vunpack.c.l.b16 %v29
  %v111 = vunpack.c.l.b16 %v30
  %v112 = vunpack.c.l.b16 %v31
  %v113 = vunpack.c.l.b16 %v32
  %v114 = vunpack.c.l.b16 %v33
  %v115 = vunpack.c.l.b16 %v34
  %v116 = vunpack.c.l.b16 %v35
  %v117 = vunpack.c.l.b16 %v36
  %v118 = vunpack.c.l.b16 %v37
  %v119 = vunpack.c.l.b16 %v38
  %v120 = vunpack.c.l.b16 %v39
  %v121 = vunpack.c.l.b16 %v40
  %v122 = vunpack.c.l.b16 %v41
  %v123 = vunpack.c.l.b16 %v42
  %v124 = vunpack.c.l.b16 %v43
  %v125 = vunpack.c.l.b16 %v44
  %v126 = vunpack.c.l.b16 %v45
  %v127 = vunpack.c.l.b16 %v46
  %v128 = vunpack.c.l.b16 %v47
  %v129 = vunpack.c.l.b16 %v48
  %v130 = vunpack.c.l.b16 %v49
  %v131 = vunpack.c.l.b16 %v50
  %v132 = vunpack.c.l.b16 %v51
  %v133 = vunpack.c.l.b16 %v52
  %v134 = vunpack.c.l.b16 %v53
  %v135 = vunpack.c.l.b16 %v54
  %v136 = vunpack.c.l.b16 %v55
  %v137 = vunpack.c.l.b16 %v56
  %v138 = vunpack.c.l.b16 %v57
  %v139 = vunpack.c.l.b16 %v58
  %v140 = vunpack.c.l.b16 %v59
  %v141 = vunpack.c.l.b16 %v60
  %v142 = vpack.c.b16 %v111, %v110
  %v143 = vpack.c.b16 %v113, %v112
  %v144 = vpack.c.b16 %v115, %v114
  %v145 = vpack.c.b16 %v117, %v116
  %v146 = vpack.c.b16 %v119, %v118
  %v147 = vpack.c.b16 %v121, %v120
  %v148 = vpack.c.b16 %v123, %v122
  %v149 = vpack.c.b16 %v125, %v124
  %v150 = vpack.c.b16 %v127, %v126
  %v151 = vpack.c.b16 %v129, %v128
  %v152 = vpack.c.b16 %v131, %v130
  %v153 = vpack.c.b16 %v133, %v132
  %v154 = vpack.c.b16 %v135, %v134
  %v155 = vpack.c.b16 %v137, %v136
  %v156 = vpack.c.b16 %v139, %v138
  %v157 = vpack.c.b16 %v141, %v140
  %174 = vmatprep.subr.bf16.mxu0 0
  %175 = vmatpush1.bf16.msra.mxu0 %v149
  %176 = vmatprep.subr.bf16.mxu0 0
  %177 = vmatpush1.bf16.msra.mxu0 %v148
  %178 = vmatprep.subr.bf16.mxu0 0
  %179 = vmatpush1.bf16.msra.mxu0 %v147
  %180 = vmatprep.subr.bf16.mxu0 0
  %181 = vmatpush1.bf16.msra.mxu0 %v146
  %182 = vmatprep.subr.bf16.mxu0 0
  %183 = vmatpush1.bf16.msra.mxu0 %v145
  %184 = vmatprep.subr.bf16.mxu0 0
  %185 = vmatpush1.bf16.msra.mxu0 %v144
  %186 = vmatprep.subr.bf16.mxu0 0
  %187 = vmatpush1.bf16.msra.mxu0 %v143
  %188 = vmatprep.subr.bf16.mxu0 0
  %189 = vmatpush1.bf16.msra.mxu0 %v142
  %190 = vmatprep.subr.bf16.mxu0 0
  %191 = vmatpush2.bf16.msra.mxu0 %v157
  %192 = vmatprep.subr.bf16.mxu0 0
  %193 = vmatpush2.bf16.msra.mxu0 %v156
  %194 = vmatprep.subr.bf16.mxu0 0
  %195 = vmatpush2.bf16.msra.mxu0 %v155
  %196 = vmatprep.subr.bf16.mxu0 0
  %197 = vmatpush2.bf16.msra.mxu0 %v154
  %198 = vmatprep.subr.bf16.mxu0 0
  %199 = vmatpush2.bf16.msra.mxu0 %v153
  %200 = vmatprep.subr.bf16.mxu0 0
  %201 = vmatpush2.bf16.msra.mxu0 %v152
  %202 = vmatprep.subr.bf16.mxu0 0
  %203 = vmatpush2.bf16.msra.mxu0 %v151
  %204 = vmatprep.subr.bf16.mxu0 0
  %205 = vmatpush2.bf16.msra.mxu0 %v150
  %206 = vmatprep.mubr.bf16.mxu0 %v75
  %207 = vmatmul.mubr.bf16.gmra.mxu0 %v74
  %v208 = vpop.f32.mrf.mxu0
  %v209 = vadd.f32 %v66, %v208
  %v210 = vpop.f32.mrf.mxu0
  %v211 = vpop.f32.mrf.mxu0
  %v212 = vadd.f32 %v66, %v211
  %v213 = vpop.f32.mrf.mxu0
  %214 = vdwg.mxu0
  %v215 = vmax.f32 %v209, 0.0
  %v216 = vmax.f32 %v212, 0.0
  %v217 = vpack.c.bf16 %v216, %v215
  %v218 = vld [vmem:[%s3] sm:$0xf]
  %v219 = vld [vmem:[%s3 + $0x4] sm:$0xf]
  %v220 = vld [vmem:[%s3 + $0x8] sm:$0xf]
  %v221 = vld [vmem:[%s3 + $0xc] sm:$0xf]
  %v222 = vld [vmem:[%s3 + $0x10] sm:$0xf]
  %v223 = vld [vmem:[%s3 + $0x14] sm:$0xf]
  %v224 = vld [vmem:[%s3 + $0x18] sm:$0xf]
  %v225 = vld [vmem:[%s3 + $0x1c] sm:$0xf]
  %v226 = vld [vmem:[%s3 + $0x20] sm:$0xf]
  %v227 = vld [vmem:[%s3 + $0x24] sm:$0xf]
  %v228 = vld [vmem:[%s3 + $0x28] sm:$0xf]
  %v229 = vld [vmem:[%s3 + $0x2c] sm:$0xf]
  %v230 = vld [vmem:[%s3 + $0x30] sm:$0xf]
  %v231 = vld [vmem:[%s3 + $0x34] sm:$0xf]
  %v232 = vld [vmem:[%s3 + $0x38] sm:$0xf]
  %v233 = vld [vmem:[%s3 + $0x3c] sm:$0xf]
  %v234 = vld [vmem:[%s4] sm:$0x1]
  %v236 = vlaneseq
  %v237 = vshrl.u32 %v236, 7
  %v238 = vsub.s32 0, %v237
  %v239 = vrot.slane %v234, %v238
  %v257 = vunpack.c.l.b16 %v218
  %v258 = vunpack.c.l.b16 %v219
  %v259 = vunpack.c.l.b16 %v220
  %v260 = vunpack.c.l.b16 %v221
  %v261 = vunpack.c.l.b16 %v222
  %v262 = vunpack.c.l.b16 %v223
  %v263 = vunpack.c.l.b16 %v224
  %v264 = vunpack.c.l.b16 %v225
  %v265 = vunpack.c.l.b16 %v226
  %v266 = vunpack.c.l.b16 %v227
  %v267 = vunpack.c.l.b16 %v228
  %v268 = vunpack.c.l.b16 %v229
  %v269 = vunpack.c.l.b16 %v230
  %v270 = vunpack.c.l.b16 %v231
  %v271 = vunpack.c.l.b16 %v232
  %v272 = vunpack.c.l.b16 %v233
  %v273 = vpack.c.b16 %v258, %v257
  %v274 = vpack.c.b16 %v260, %v259
  %v275 = vpack.c.b16 %v262, %v261
  %v276 = vpack.c.b16 %v264, %v263
  %v277 = vpack.c.b16 %v266, %v265
  %v278 = vpack.c.b16 %v268, %v267
  %v279 = vpack.c.b16 %v270, %v269
  %v280 = vpack.c.b16 %v272, %v271
  %289 = vmatprep.subr.bf16.mxu0 0
  %290 = vmatpush1.bf16.msra.mxu0 %v280
  %291 = vmatprep.subr.bf16.mxu0 0
  %292 = vmatpush1.bf16.msra.mxu0 %v279
  %293 = vmatprep.subr.bf16.mxu0 0
  %294 = vmatpush1.bf16.msra.mxu0 %v278
  %295 = vmatprep.subr.bf16.mxu0 0
  %296 = vmatpush1.bf16.msra.mxu0 %v277
  %297 = vmatprep.subr.bf16.mxu0 0
  %298 = vmatpush1.bf16.msra.mxu0 %v276
  %299 = vmatprep.subr.bf16.mxu0 0
  %300 = vmatpush1.bf16.msra.mxu0 %v275
  %301 = vmatprep.subr.bf16.mxu0 0
  %302 = vmatpush1.bf16.msra.mxu0 %v274
  %303 = vmatprep.subr.bf16.mxu0 0
  %304 = vmatpush1.bf16.msra.mxu0 %v273
  %305 = vmatprep.subr.bf16.mxu0 0
  %306 = vmatpush2.bf16.msra.mxu0 0
  %307 = vmatprep.subr.bf16.mxu0 0
  %308 = vmatpush2.bf16.msra.mxu0 0
  %309 = vmatprep.subr.bf16.mxu0 0
  %310 = vmatpush2.bf16.msra.mxu0 0
  %311 = vmatprep.subr.bf16.mxu0 0
  %312 = vmatpush2.bf16.msra.mxu0 0
  %313 = vmatprep.subr.bf16.mxu0 0
  %314 = vmatpush2.bf16.msra.mxu0 0
  %315 = vmatprep.subr.bf16.mxu0 0
  %316 = vmatpush2.bf16.msra.mxu0 0
  %317 = vmatprep.subr.bf16.mxu0 0
  %318 = vmatpush2.bf16.msra.mxu0 0
  %319 = vmatprep.subr.bf16.mxu0 0
  %320 = vmatpush2.bf16.msra.mxu0 0
  %321 = vmatprep.mubr.bf16.mxu0 0
  %322 = vmatmul.mubr.bf16.gmra.mxu0 %v217
  %v323 = vpop.f32.mrf.mxu0
  %v324 = vadd.f32 %v239, %v323
  %v325 = vpop.f32.mrf.mxu0
  %v326 = vpop.f32.mrf.mxu0
  %v327 = vadd.f32 %v239, %v326
  %v328 = vpop.f32.mrf.mxu0
  %329 = vdwg.mxu0
  %v330 = vmax.f32 %v324, 0.0
  %v331 = vmax.f32 %v327, 0.0
  %v332 = vpack.c.bf16 %v331, %v330
  %v333 = vld [vmem:[%s5] sm:$0xf]
  %v334 = vld [vmem:[%s5 + $0x4] sm:$0xf]
  %v335 = vld [vmem:[%s5 + $0x8] sm:$0xf]
  %v336 = vld [vmem:[%s5 + $0xc] sm:$0xf]
  %v337 = vld [vmem:[%s5 + $0x10] sm:$0xf]
  %v338 = vld [vmem:[%s5 + $0x14] sm:$0xf]
  %v339 = vld [vmem:[%s5 + $0x18] sm:$0xf]
  %v340 = vld [vmem:[%s5 + $0x1c] sm:$0xf]
  %v341 = vld [vmem:[%s5 + $0x20] sm:$0xf]
  %v342 = vld [vmem:[%s5 + $0x24] sm:$0xf]
  %v343 = vld [vmem:[%s5 + $0x28] sm:$0xf]
  %v344 = vld [vmem:[%s5 + $0x2c] sm:$0xf]
  %v345 = vld [vmem:[%s5 + $0x30] sm:$0xf]
  %v346 = vld [vmem:[%s5 + $0x34] sm:$0xf]
  %v347 = vld [vmem:[%s5 + $0x38] sm:$0xf]
  %v348 = vld [vmem:[%s5 + $0x3c] sm:$0xf]
  %v349 = vld [vmem:[%s6] sm:$0x1]
  %v351 = vlaneseq
  %v352 = vshrl.u32 %v351, 7
  %v353 = vsub.s32 0, %v352
  %v354 = vrot.slane %v349, %v353
  %v372 = vunpack.c.l.b16 %v333
  %v373 = vunpack.c.l.b16 %v334
  %v374 = vunpack.c.l.b16 %v335
  %v375 = vunpack.c.l.b16 %v336
  %v376 = vunpack.c.l.b16 %v337
  %v377 = vunpack.c.l.b16 %v338
  %v378 = vunpack.c.l.b16 %v339
  %v379 = vunpack.c.l.b16 %v340
  %v380 = vunpack.c.l.b16 %v341
  %v381 = vunpack.c.l.b16 %v342
  %v382 = vunpack.c.l.b16 %v343
  %v383 = vunpack.c.l.b16 %v344
  %v384 = vunpack.c.l.b16 %v345
  %v385 = vunpack.c.l.b16 %v346
  %v386 = vunpack.c.l.b16 %v347
  %v387 = vunpack.c.l.b16 %v348
  %v388 = vpack.c.b16 %v373, %v372
  %v389 = vpack.c.b16 %v375, %v374
  %v390 = vpack.c.b16 %v377, %v376
  %v391 = vpack.c.b16 %v379, %v378
  %v392 = vpack.c.b16 %v381, %v380
  %v393 = vpack.c.b16 %v383, %v382
  %v394 = vpack.c.b16 %v385, %v384
  %v395 = vpack.c.b16 %v387, %v386
  %404 = vmatprep.subr.bf16.mxu0 0
  %405 = vmatpush1.bf16.msra.mxu0 %v395
  %406 = vmatprep.subr.bf16.mxu0 0
  %407 = vmatpush1.bf16.msra.mxu0 %v394
  %408 = vmatprep.subr.bf16.mxu0 0
  %409 = vmatpush1.bf16.msra.mxu0 %v393
  %410 = vmatprep.subr.bf16.mxu0 0
  %411 = vmatpush1.bf16.msra.mxu0 %v392
  %412 = vmatprep.subr.bf16.mxu0 0
  %413 = vmatpush1.bf16.msra.mxu0 %v391
  %414 = vmatprep.subr.bf16.mxu0 0
  %415 = vmatpush1.bf16.msra.mxu0 %v390
  %416 = vmatprep.subr.bf16.mxu0 0
  %417 = vmatpush1.bf16.msra.mxu0 %v389
  %418 = vmatprep.subr.bf16.mxu0 0
  %419 = vmatpush1.bf16.msra.mxu0 %v388
  %420 = vmatprep.subr.bf16.mxu0 0
  %421 = vmatpush2.bf16.msra.mxu0 0
  %422 = vmatprep.subr.bf16.mxu0 0
  %423 = vmatpush2.bf16.msra.mxu0 0
  %424 = vmatprep.subr.bf16.mxu0 0
  %425 = vmatpush2.bf16.msra.mxu0 0
  %426 = vmatprep.subr.bf16.mxu0 0
  %427 = vmatpush2.bf16.msra.mxu0 0
  %428 = vmatprep.subr.bf16.mxu0 0
  %429 = vmatpush2.bf16.msra.mxu0 0
  %430 = vmatprep.subr.bf16.mxu0 0
  %431 = vmatpush2.bf16.msra.mxu0 0
  %432 = vmatprep.subr.bf16.mxu0 0
  %433 = vmatpush2.bf16.msra.mxu0 0
  %434 = vmatprep.subr.bf16.mxu0 0
  %435 = vmatpush2.bf16.msra.mxu0 0
  %436 = vmatprep.mubr.bf16.mxu0 0
  %437 = vmatmul.mubr.bf16.gmra.mxu0 %v332
  %v438 = vpop.f32.mrf.mxu0
  %v439 = vadd.f32 %v354, %v438
  %v440 = vpop.f32.mrf.mxu0
  %v441 = vpop.f32.mrf.mxu0
  %v442 = vadd.f32 %v354, %v441
  %v443 = vpop.f32.mrf.mxu0
  %444 = vdwg.mxu0
  %445 = vst [vmem:[%s7] sm:$0xff] %v439
  %446 = vst [vmem:[%s7 + $0x8] sm:$0xff] %v442
  // Predicated region
  $region30: #{forward.5} parent=0 // pred_check
    _
  $region31: #{forward.5} parent=0 // pred_check_branch
    %448 = sbr.rel (0) target = $region33
  $region32: #{forward.5} parent=0 // pred_region
    _
  $region33: #{forward.5} parent=0 // pred_fallthru
    _
  // Predicated region
  $region34: #{forward.5} parent=0 // pred_check
    _
  $region35: #{forward.5} parent=0 // pred_check_branch
    %450 = sbr.rel (0) target = $region37
  $region36: #{forward.5} parent=0 // pred_region
    _
  $region37: #{forward.5} parent=0 // pred_fallthru
    _

// kernel: forward.4
$region0: #{forward.4}
  #allocation0 [shape = 'u32[]', space=smem, size = 0x4, offset = 0x4, fixed_abs, tag = 'smem constant byte address 0x4 - core index']
  #allocation1 [shape = 'u32[144,128]{1,0:T(1,128)}', space=vmem, size = 0x12000, scoped, tag = 'internal scratch']
  %s0 = inlined_call_operand.vmem [shape: bf16[16,768], index: 0, kind: input, shape index: {}]
  %s1 = inlined_call_operand.vmem [shape: bf16[768,128], index: 1, kind: input, shape index: {}]
  %s2 = inlined_call_operand.vmem [shape: f32[1,128], index: 2, kind: input, shape index: {}]
  %s3 = inlined_call_operand.vmem [shape: bf16[16,128], index: 3, kind: output, shape index: {}]
  %s4 = sld [smem:[#allocation0]]
  $region22: #{forward.4} parent=0
    _
  %s6 = ssub.s32 1, %s4
  %s7 = scalar_select 0, %s6, %s4
  // Predicated region
  $region2: #{forward.4} parent=0 // pred_check
    _
  $region3: #{forward.4} parent=0 // pred_check_branch
    %9 = sbr.rel (0) target = $region5
  $region4: #{forward.4} parent=0 // pred_region
    _
  $region5: #{forward.4} parent=0 // pred_fallthru
    _
  // Predicated region
  $region6: #{forward.4} parent=0 // pred_check
    _
  $region7: #{forward.4} parent=0 // pred_check_branch
    %11 = sbr.rel (0) target = $region9
  $region8: #{forward.4} parent=0 // pred_region
    _
  $region9: #{forward.4} parent=0 // pred_fallthru
    _
  // Predicated region
  $region10: #{forward.4} parent=0 // pred_check
    _
  $region11: #{forward.4} parent=0 // pred_check_branch
    %13 = sbr.rel (0) target = $region13
  $region12: #{forward.4} parent=0 // pred_region
    _
  $region13: #{forward.4} parent=0 // pred_fallthru
    _
  %v15 = vld [vmem:[%s0] sm:$0xff]
  %v16 = vld [vmem:[%s0 + $0x8] sm:$0xff]
  %v17 = vld [vmem:[%s0 + $0x10] sm:$0xff]
  %v18 = vld [vmem:[%s0 + $0x18] sm:$0xff]
  %v19 = vld [vmem:[%s0 + $0x20] sm:$0xff]
  %v20 = vld [vmem:[%s0 + $0x28] sm:$0xff]
  %v21 = vld [vmem:[%s1] sm:$0xf]
  %v22 = vld [vmem:[%s1 + $0x4] sm:$0xf]
  %v23 = vld [vmem:[%s1 + $0x8] sm:$0xf]
  %v24 = vld [vmem:[%s1 + $0xc] sm:$0xf]
  %v25 = vld [vmem:[%s1 + $0x10] sm:$0xf]
  %v26 = vld [vmem:[%s1 + $0x14] sm:$0xf]
  %v27 = vld [vmem:[%s1 + $0x18] sm:$0xf]
  %v28 = vld [vmem:[%s1 + $0x1c] sm:$0xf]
  %v29 = vld [vmem:[%s1 + $0x20] sm:$0xf]
  %v30 = vld [vmem:[%s1 + $0x24] sm:$0xf]
  %v31 = vld [vmem:[%s1 + $0x28] sm:$0xf]
  %v32 = vld [vmem:[%s1 + $0x2c] sm:$0xf]
  %v33 = vld [vmem:[%s1 + $0x30] sm:$0xf]
  %v34 = vld [vmem:[%s1 + $0x34] sm:$0xf]
  %v35 = vld [vmem:[%s1 + $0x38] sm:$0xf]
  %v36 = vld [vmem:[%s1 + $0x3c] sm:$0xf]
  %v37 = vld [vmem:[%s1 + $0x40] sm:$0xf]
  %v38 = vld [vmem:[%s1 + $0x44] sm:$0xf]
  %v39 = vld [vmem:[%s1 + $0x48] sm:$0xf]
  %v40 = vld [vmem:[%s1 + $0x4c] sm:$0xf]
  %v41 = vld [vmem:[%s1 + $0x50] sm:$0xf]
  %v42 = vld [vmem:[%s1 + $0x54] sm:$0xf]
  %v43 = vld [vmem:[%s1 + $0x58] sm:$0xf]
  %v44 = vld [vmem:[%s1 + $0x5c] sm:$0xf]
  %v45 = vld [vmem:[%s1 + $0x60] sm:$0xf]
  %v46 = vld [vmem:[%s1 + $0x64] sm:$0xf]
  %v47 = vld [vmem:[%s1 + $0x68] sm:$0xf]
  %v48 = vld [vmem:[%s1 + $0x6c] sm:$0xf]
  %v49 = vld [vmem:[%s1 + $0x70] sm:$0xf]
  %v50 = vld [vmem:[%s1 + $0x74] sm:$0xf]
  %v51 = vld [vmem:[%s1 + $0x78] sm:$0xf]
  %v52 = vld [vmem:[%s1 + $0x7c] sm:$0xf]
  %v53 = vld [vmem:[%s1 + $0x80] sm:$0xf]
  %v54 = vld [vmem:[%s1 + $0x84] sm:$0xf]
  %v55 = vld [vmem:[%s1 + $0x88] sm:$0xf]
  %v56 = vld [vmem:[%s1 + $0x8c] sm:$0xf]
  %v57 = vld [vmem:[%s1 + $0x90] sm:$0xf]
  %v58 = vld [vmem:[%s1 + $0x94] sm:$0xf]
  %v59 = vld [vmem:[%s1 + $0x98] sm:$0xf]
  %v60 = vld [vmem:[%s1 + $0x9c] sm:$0xf]
  %v61 = vld [vmem:[%s1 + $0xa0] sm:$0xf]
  %v62 = vld [vmem:[%s1 + $0xa4] sm:$0xf]
  %v63 = vld [vmem:[%s1 + $0xa8] sm:$0xf]
  %v64 = vld [vmem:[%s1 + $0xac] sm:$0xf]
  %v65 = vld [vmem:[%s1 + $0xb0] sm:$0xf]
  %v66 = vld [vmem:[%s1 + $0xb4] sm:$0xf]
  %v67 = vld [vmem:[%s1 + $0xb8] sm:$0xf]
  %v68 = vld [vmem:[%s1 + $0xbc] sm:$0xf]
  %v69 = vld [vmem:[%s1 + $0xc0] sm:$0xf]
  %v70 = vld [vmem:[%s1 + $0xc4] sm:$0xf]
  %v71 = vld [vmem:[%s1 + $0xc8] sm:$0xf]
  %v72 = vld [vmem:[%s1 + $0xcc] sm:$0xf]
  %v73 = vld [vmem:[%s1 + $0xd0] sm:$0xf]
  %v74 = vld [vmem:[%s1 + $0xd4] sm:$0xf]
  %v75 = vld [vmem:[%s1 + $0xd8] sm:$0xf]
  %v76 = vld [vmem:[%s1 + $0xdc] sm:$0xf]
  %v77 = vld [vmem:[%s1 + $0xe0] sm:$0xf]
  %v78 = vld [vmem:[%s1 + $0xe4] sm:$0xf]
  %v79 = vld [vmem:[%s1 + $0xe8] sm:$0xf]
  %v80 = vld [vmem:[%s1 + $0xec] sm:$0xf]
  %v81 = vld [vmem:[%s1 + $0xf0] sm:$0xf]
  %v82 = vld [vmem:[%s1 + $0xf4] sm:$0xf]
  %v83 = vld [vmem:[%s1 + $0xf8] sm:$0xf]
  %v84 = vld [vmem:[%s1 + $0xfc] sm:$0xf]
  %v85 = vld [vmem:[%s1 + $0x100] sm:$0xf]
  %v86 = vld [vmem:[%s1 + $0x104] sm:$0xf]
  %v87 = vld [vmem:[%s1 + $0x108] sm:$0xf]
  %v88 = vld [vmem:[%s1 + $0x10c] sm:$0xf]
  %v89 = vld [vmem:[%s1 + $0x110] sm:$0xf]
  %v90 = vld [vmem:[%s1 + $0x114] sm:$0xf]
  %v91 = vld [vmem:[%s1 + $0x118] sm:$0xf]
  %v92 = vld [vmem:[%s1 + $0x11c] sm:$0xf]
  %v93 = vld [vmem:[%s1 + $0x120] sm:$0xf]
  %v94 = vld [vmem:[%s1 + $0x124] sm:$0xf]
  %v95 = vld [vmem:[%s1 + $0x128] sm:$0xf]
  %v96 = vld [vmem:[%s1 + $0x12c] sm:$0xf]
  %v97 = vld [vmem:[%s1 + $0x130] sm:$0xf]
  %v98 = vld [vmem:[%s1 + $0x134] sm:$0xf]
  %v99 = vld [vmem:[%s1 + $0x138] sm:$0xf]
  %v100 = vld [vmem:[%s1 + $0x13c] sm:$0xf]
  %v101 = vld [vmem:[%s1 + $0x140] sm:$0xf]
  %v102 = vld [vmem:[%s1 + $0x144] sm:$0xf]
  %v103 = vld [vmem:[%s1 + $0x148] sm:$0xf]
  %v104 = vld [vmem:[%s1 + $0x14c] sm:$0xf]
  %v105 = vld [vmem:[%s1 + $0x150] sm:$0xf]
  %v106 = vld [vmem:[%s1 + $0x154] sm:$0xf]
  %v107 = vld [vmem:[%s1 + $0x158] sm:$0xf]
  %v108 = vld [vmem:[%s1 + $0x15c] sm:$0xf]
  %v109 = vld [vmem:[%s1 + $0x160] sm:$0xf]
  %v110 = vld [vmem:[%s1 + $0x164] sm:$0xf]
  %v111 = vld [vmem:[%s1 + $0x168] sm:$0xf]
  %v112 = vld [vmem:[%s1 + $0x16c] sm:$0xf]
  %v113 = vld [vmem:[%s1 + $0x170] sm:$0xf]
  %v114 = vld [vmem:[%s1 + $0x174] sm:$0xf]
  %v115 = vld [vmem:[%s1 + $0x178] sm:$0xf]
  %v116 = vld [vmem:[%s1 + $0x17c] sm:$0xf]
  %v117 = vld [vmem:[%s2] sm:$0x1]
  %v119 = vlaneseq
  %v120 = vshrl.u32 %v119, 7
  %v121 = vsub.s32 0, %v120
  %v122 = vrot.slane %v117, %v121
  %v130 = vunpack.c.l.b16 %v15
  %v131 = vunpack.c.h.b16 %v15
  %v132 = vunpack.c.l.b16 %v16
  %v133 = vunpack.c.h.b16 %v16
  %v134 = vunpack.c.l.b16 %v17
  %v135 = vunpack.c.h.b16 %v17
  %v136 = vunpack.c.l.b16 %v18
  %v137 = vunpack.c.h.b16 %v18
  %v138 = vunpack.c.l.b16 %v19
  %v139 = vunpack.c.h.b16 %v19
  %v140 = vunpack.c.l.b16 %v20
  %v141 = vunpack.c.h.b16 %v20
  %v142 = vpack.c.b16 %v136, %v130
  %v143 = vpack.c.b16 %v137, %v131
  %v144 = vpack.c.b16 %v138, %v132
  %v145 = vpack.c.b16 %v139, %v133
  %v146 = vpack.c.b16 %v140, %v134
  %v147 = vpack.c.b16 %v141, %v135
  %v250 = vunpack.c.l.b16 %v21
  %v251 = vunpack.c.l.b16 %v22
  %v252 = vunpack.c.l.b16 %v23
  %v253 = vunpack.c.l.b16 %v24
  %v254 = vunpack.c.l.b16 %v25
  %v255 = vunpack.c.l.b16 %v26
  %v256 = vunpack.c.l.b16 %v27
  %v257 = vunpack.c.l.b16 %v28
  %v258 = vunpack.c.l.b16 %v29
  %v259 = vunpack.c.l.b16 %v30
  %v260 = vunpack.c.l.b16 %v31
  %v261 = vunpack.c.l.b16 %v32
  %v262 = vunpack.c.l.b16 %v33
  %v263 = vunpack.c.l.b16 %v34
  %v264 = vunpack.c.l.b16 %v35
  %v265 = vunpack.c.l.b16 %v36
  %v266 = vunpack.c.l.b16 %v37
  %v267 = vunpack.c.l.b16 %v38
  %v268 = vunpack.c.l.b16 %v39
  %v269 = vunpack.c.l.b16 %v40
  %v270 = vunpack.c.l.b16 %v41
  %v271 = vunpack.c.l.b16 %v42
  %v272 = vunpack.c.l.b16 %v43
  %v273 = vunpack.c.l.b16 %v44
  %v274 = vunpack.c.l.b16 %v45
  %v275 = vunpack.c.l.b16 %v46
  %v276 = vunpack.c.l.b16 %v47
  %v277 = vunpack.c.l.b16 %v48
  %v278 = vunpack.c.l.b16 %v49
  %v279 = vunpack.c.l.b16 %v50
  %v280 = vunpack.c.l.b16 %v51
  %v281 = vunpack.c.l.b16 %v52
  %v282 = vunpack.c.l.b16 %v53
  %v283 = vunpack.c.l.b16 %v54
  %v284 = vunpack.c.l.b16 %v55
  %v285 = vunpack.c.l.b16 %v56
  %v286 = vunpack.c.l.b16 %v57
  %v287 = vunpack.c.l.b16 %v58
  %v288 = vunpack.c.l.b16 %v59
  %v289 = vunpack.c.l.b16 %v60
  %v290 = vunpack.c.l.b16 %v61
  %v291 = vunpack.c.l.b16 %v62
  %v292 = vunpack.c.l.b16 %v63
  %v293 = vunpack.c.l.b16 %v64
  %v294 = vunpack.c.l.b16 %v65
  %v295 = vunpack.c.l.b16 %v66
  %v296 = vunpack.c.l.b16 %v67
  %v297 = vunpack.c.l.b16 %v68
  %v298 = vunpack.c.l.b16 %v69
  %v299 = vunpack.c.l.b16 %v70
  %v300 = vunpack.c.l.b16 %v71
  %v301 = vunpack.c.l.b16 %v72
  %v302 = vunpack.c.l.b16 %v73
  %v303 = vunpack.c.l.b16 %v74
  %v304 = vunpack.c.l.b16 %v75
  %v305 = vunpack.c.l.b16 %v76
  %v306 = vunpack.c.l.b16 %v77
  %v307 = vunpack.c.l.b16 %v78
  %v308 = vunpack.c.l.b16 %v79
  %v309 = vunpack.c.l.b16 %v80
  %v310 = vunpack.c.l.b16 %v81
  %v311 = vunpack.c.l.b16 %v82
  %v312 = vunpack.c.l.b16 %v83
  %v313 = vunpack.c.l.b16 %v84
  %v314 = vunpack.c.l.b16 %v85
  %v315 = vunpack.c.l.b16 %v86
  %v316 = vunpack.c.l.b16 %v87
  %v317 = vunpack.c.l.b16 %v88
  %v318 = vunpack.c.l.b16 %v89
  %v319 = vunpack.c.l.b16 %v90
  %v320 = vunpack.c.l.b16 %v91
  %v321 = vunpack.c.l.b16 %v92
  %v322 = vunpack.c.l.b16 %v93
  %v323 = vunpack.c.l.b16 %v94
  %v324 = vunpack.c.l.b16 %v95
  %v325 = vunpack.c.l.b16 %v96
  %v326 = vunpack.c.l.b16 %v97
  %v327 = vunpack.c.l.b16 %v98
  %v328 = vunpack.c.l.b16 %v99
  %v329 = vunpack.c.l.b16 %v100
  %v330 = vunpack.c.l.b16 %v101
  %v331 = vunpack.c.l.b16 %v102
  %v332 = vunpack.c.l.b16 %v103
  %v333 = vunpack.c.l.b16 %v104
  %v334 = vunpack.c.l.b16 %v105
  %v335 = vunpack.c.l.b16 %v106
  %v336 = vunpack.c.l.b16 %v107
  %v337 = vunpack.c.l.b16 %v108
  %v338 = vunpack.c.l.b16 %v109
  %v339 = vunpack.c.l.b16 %v110
  %v340 = vunpack.c.l.b16 %v111
  %v341 = vunpack.c.l.b16 %v112
  %v342 = vunpack.c.l.b16 %v113
  %v343 = vunpack.c.l.b16 %v114
  %v344 = vunpack.c.l.b16 %v115
  %v345 = vunpack.c.l.b16 %v116
  %v346 = vpack.c.b16 %v251, %v250
  %v347 = vpack.c.b16 %v253, %v252
  %v348 = vpack.c.b16 %v255, %v254
  %v349 = vpack.c.b16 %v257, %v256
  %v350 = vpack.c.b16 %v259, %v258
  %v351 = vpack.c.b16 %v261, %v260
  %v352 = vpack.c.b16 %v263, %v262
  %v353 = vpack.c.b16 %v265, %v264
  %v354 = vpack.c.b16 %v267, %v266
  %v355 = vpack.c.b16 %v269, %v268
  %v356 = vpack.c.b16 %v271, %v270
  %v357 = vpack.c.b16 %v273, %v272
  %v358 = vpack.c.b16 %v275, %v274
  %v359 = vpack.c.b16 %v277, %v276
  %v360 = vpack.c.b16 %v279, %v278
  %v361 = vpack.c.b16 %v281, %v280
  %v362 = vpack.c.b16 %v283, %v282
  %v363 = vpack.c.b16 %v285, %v284
  %v364 = vpack.c.b16 %v287, %v286
  %v365 = vpack.c.b16 %v289, %v288
  %v366 = vpack.c.b16 %v291, %v290
  %v367 = vpack.c.b16 %v293, %v292
  %v368 = vpack.c.b16 %v295, %v294
  %v369 = vpack.c.b16 %v297, %v296
  %v370 = vpack.c.b16 %v299, %v298
  %v371 = vpack.c.b16 %v301, %v300
  %v372 = vpack.c.b16 %v303, %v302
  %v373 = vpack.c.b16 %v305, %v304
  %v374 = vpack.c.b16 %v307, %v306
  %v375 = vpack.c.b16 %v309, %v308
  %v376 = vpack.c.b16 %v311, %v310
  %v377 = vpack.c.b16 %v313, %v312
  %v378 = vpack.c.b16 %v315, %v314
  %v379 = vpack.c.b16 %v317, %v316
  %v380 = vpack.c.b16 %v319, %v318
  %v381 = vpack.c.b16 %v321, %v320
  %v382 = vpack.c.b16 %v323, %v322
  %v383 = vpack.c.b16 %v325, %v324
  %v384 = vpack.c.b16 %v327, %v326
  %v385 = vpack.c.b16 %v329, %v328
  %v386 = vpack.c.b16 %v331, %v330
  %v387 = vpack.c.b16 %v333, %v332
  %v388 = vpack.c.b16 %v335, %v334
  %v389 = vpack.c.b16 %v337, %v336
  %v390 = vpack.c.b16 %v339, %v338
  %v391 = vpack.c.b16 %v341, %v340
  %v392 = vpack.c.b16 %v343, %v342
  %v393 = vpack.c.b16 %v345, %v344
  %442 = vmatprep.subr.bf16.mxu0 0
  %443 = vmatpush1.bf16.msra.mxu0 %v353
  %444 = vmatprep.subr.bf16.mxu0 0
  %445 = vmatpush1.bf16.msra.mxu0 %v352
  %446 = vmatprep.subr.bf16.mxu0 0
  %447 = vmatpush1.bf16.msra.mxu0 %v351
  %448 = vmatprep.subr.bf16.mxu0 0
  %449 = vmatpush1.bf16.msra.mxu0 %v350
  %450 = vmatprep.subr.bf16.mxu0 0
  %451 = vmatpush1.bf16.msra.mxu0 %v349
  %452 = vmatprep.subr.bf16.mxu0 0
  %453 = vmatpush1.bf16.msra.mxu0 %v348
  %454 = vmatprep.subr.bf16.mxu0 0
  %455 = vmatpush1.bf16.msra.mxu0 %v347
  %456 = vmatprep.subr.bf16.mxu0 0
  %457 = vmatpush1.bf16.msra.mxu0 %v346
  %458 = vmatprep.subr.bf16.mxu0 0
  %459 = vmatpush2.bf16.msra.mxu0 %v361
  %460 = vmatprep.subr.bf16.mxu0 0
  %461 = vmatpush2.bf16.msra.mxu0 %v360
  %462 = vmatprep.subr.bf16.mxu0 0
  %463 = vmatpush2.bf16.msra.mxu0 %v359
  %464 = vmatprep.subr.bf16.mxu0 0
  %465 = vmatpush2.bf16.msra.mxu0 %v358
  %466 = vmatprep.subr.bf16.mxu0 0
  %467 = vmatpush2.bf16.msra.mxu0 %v357
  %468 = vmatprep.subr.bf16.mxu0 0
  %469 = vmatpush2.bf16.msra.mxu0 %v356
  %470 = vmatprep.subr.bf16.mxu0 0
  %471 = vmatpush2.bf16.msra.mxu0 %v355
  %472 = vmatprep.subr.bf16.mxu0 0
  %473 = vmatpush2.bf16.msra.mxu0 %v354
  %474 = vmatprep.mubr.bf16.mxu0 %v143
  %475 = vmatmul.mubr.bf16.gmra.mxu0 %v142
  %v476 = vpop.f32.mrf.mxu0
  %v477 = vadd.f32 %v122, %v476
  %v478 = vpop.f32.mrf.mxu0
  %v479 = vpop.f32.mrf.mxu0
  %v480 = vadd.f32 %v122, %v479
  %v481 = vpop.f32.mrf.mxu0
  %482 = vdwg.mxu0
  %483 = vmatprep.subr.bf16.mxu0 0
  %484 = vmatpush1.bf16.msra.mxu0 %v369
  %485 = vmatprep.subr.bf16.mxu0 0
  %486 = vmatpush1.bf16.msra.mxu0 %v368
  %487 = vmatprep.subr.bf16.mxu0 0
  %488 = vmatpush1.bf16.msra.mxu0 %v367
  %489 = vmatprep.subr.bf16.mxu0 0
  %490 = vmatpush1.bf16.msra.mxu0 %v366
  %491 = vmatprep.subr.bf16.mxu0 0
  %492 = vmatpush1.bf16.msra.mxu0 %v365
  %493 = vmatprep.subr.bf16.mxu0 0
  %494 = vmatpush1.bf16.msra.mxu0 %v364
  %495 = vmatprep.subr.bf16.mxu0 0
  %496 = vmatpush1.bf16.msra.mxu0 %v363
  %497 = vmatprep.subr.bf16.mxu0 0
  %498 = vmatpush1.bf16.msra.mxu0 %v362
  %499 = vmatprep.subr.bf16.mxu0 0
  %500 = vmatpush2.bf16.msra.mxu0 %v377
  %501 = vmatprep.subr.bf16.mxu0 0
  %502 = vmatpush2.bf16.msra.mxu0 %v376
  %503 = vmatprep.subr.bf16.mxu0 0
  %504 = vmatpush2.bf16.msra.mxu0 %v375
  %505 = vmatprep.subr.bf16.mxu0 0
  %506 = vmatpush2.bf16.msra.mxu0 %v374
  %507 = vmatprep.subr.bf16.mxu0 0
  %508 = vmatpush2.bf16.msra.mxu0 %v373
  %509 = vmatprep.subr.bf16.mxu0 0
  %510 = vmatpush2.bf16.msra.mxu0 %v372
  %511 = vmatprep.subr.bf16.mxu0 0
  %512 = vmatpush2.bf16.msra.mxu0 %v371
  %513 = vmatprep.subr.bf16.mxu0 0
  %514 = vmatpush2.bf16.msra.mxu0 %v370
  %515 = vmatprep.mubr.bf16.mxu0 %v145
  %516 = vmatmul.mubr.bf16.gmra.mxu0 %v144
  %v517 = vpop.f32.mrf.mxu0
  %v518 = vadd.f32 %v477, %v517
  %v519 = vpop.f32.mrf.mxu0
  %v520 = vpop.f32.mrf.mxu0
  %v521 = vadd.f32 %v480, %v520
  %v522 = vpop.f32.mrf.mxu0
  %523 = vdwg.mxu0
  %524 = vmatprep.subr.bf16.mxu0 0
  %525 = vmatpush1.bf16.msra.mxu0 %v385
  %526 = vmatprep.subr.bf16.mxu0 0
  %527 = vmatpush1.bf16.msra.mxu0 %v384
  %528 = vmatprep.subr.bf16.mxu0 0
  %529 = vmatpush1.bf16.msra.mxu0 %v383
  %530 = vmatprep.subr.bf16.mxu0 0
  %531 = vmatpush1.bf16.msra.mxu0 %v382
  %532 = vmatprep.subr.bf16.mxu0 0
  %533 = vmatpush1.bf16.msra.mxu0 %v381
  %534 = vmatprep.subr.bf16.mxu0 0
  %535 = vmatpush1.bf16.msra.mxu0 %v380
  %536 = vmatprep.subr.bf16.mxu0 0
  %537 = vmatpush1.bf16.msra.mxu0 %v379
  %538 = vmatprep.subr.bf16.mxu0 0
  %539 = vmatpush1.bf16.msra.mxu0 %v378
  %540 = vmatprep.subr.bf16.mxu0 0
  %541 = vmatpush2.bf16.msra.mxu0 %v393
  %542 = vmatprep.subr.bf16.mxu0 0
  %543 = vmatpush2.bf16.msra.mxu0 %v392
  %544 = vmatprep.subr.bf16.mxu0 0
  %545 = vmatpush2.bf16.msra.mxu0 %v391
  %546 = vmatprep.subr.bf16.mxu0 0
  %547 = vmatpush2.bf16.msra.mxu0 %v390
  %548 = vmatprep.subr.bf16.mxu0 0
  %549 = vmatpush2.bf16.msra.mxu0 %v389
  %550 = vmatprep.subr.bf16.mxu0 0
  %551 = vmatpush2.bf16.msra.mxu0 %v388
  %552 = vmatprep.subr.bf16.mxu0 0
  %553 = vmatpush2.bf16.msra.mxu0 %v387
  %554 = vmatprep.subr.bf16.mxu0 0
  %555 = vmatpush2.bf16.msra.mxu0 %v386
  %556 = vmatprep.mubr.bf16.mxu0 %v147
  %557 = vmatmul.mubr.bf16.gmra.mxu0 %v146
  %v558 = vpop.f32.mrf.mxu0
  %v559 = vadd.f32 %v518, %v558
  %v560 = vpop.f32.mrf.mxu0
  %v561 = vpop.f32.mrf.mxu0
  %v562 = vadd.f32 %v521, %v561
  %v563 = vpop.f32.mrf.mxu0
  %564 = vdwg.mxu0
  %v565 = vmax.f32 %v559, 0.0
  %v566 = vmax.f32 %v562, 0.0
  %v567 = vpack.c.bf16 %v566, %v565
  %v569 = vunpack.c.l.b16 %v567
  %v570 = vunpack.c.h.b16 %v567
  %v571 = vpack.c.b16 %v569, %v569
  %v572 = vpack.c.b16 %v570, %v570
  %575 = vst [vmem:[%s3] sm:$0xf] %v571
  %576 = vst [vmem:[%s3 + $0x4] sm:$0xf] %v572
  // Predicated region
  $region14: #{forward.4} parent=0 // pred_check
    _
  $region15: #{forward.4} parent=0 // pred_check_branch
    %578 = sbr.rel (0) target = $region17
  $region16: #{forward.4} parent=0 // pred_region
    _
  $region17: #{forward.4} parent=0 // pred_fallthru
    _
  // Predicated region
  $region18: #{forward.4} parent=0 // pred_check
    _
  $region19: #{forward.4} parent=0 // pred_check_branch
    %580 = sbr.rel (0) target = $region21
  $region20: #{forward.4} parent=0 // pred_region
    _
  $region21: #{forward.4} parent=0 // pred_fallthru
    _

</llo_original>
